<compile_context>
chip_gen: v7x
topology: tpu7x:2x2x1
jax: 0.10.0
libtpu: 0.0.40
codegen_flags: <defaults>
</compile_context>

<pallas_src>
import jax
import jax.numpy as jnp
from jax.experimental import pallas as pl
from jax.experimental.pallas import tpu as pltpu

VOCAB_SIZE = 7000
EMBEDDING_DIM = 100
HIDDEN_DIM = 50
NUM_CLASSES = 27

GATE_LANES = 128                 # each gate padded to its own lane tile
NUM_GATES = 4
GP = NUM_GATES * GATE_LANES      # padded 4H = 512
HP = 128                         # padded hidden-state lanes
CP = 128                         # padded output lanes (lane-dense store)
TT_CHUNK = 4                     # timesteps per grid step (raise for long T)
BB = 8                           # batch block (sublane-aligned)


def rnn_lstm_kernel(x_ref, len_ref, wih_ref, whh_ref, b_ref, wl_ref, bl_ref,
                    out_ref, h_ref, c_ref):
    # x_ref:   (TT, BB, E)  time-major embedded chunk
    # len_ref: (BB, 1)      int32 sequence lengths for this batch block
    # wih_ref: (E, 512)     W_ih^T, gate g in lanes [g*128, g*128+H)
    # whh_ref: (128, 512)   W_hh^T, rows >= H zeroed
    # b_ref:   (1, 512)     b_ih + b_hh, padded lanes zero
    # wl_ref:  (128, 128)   linear.weight^T, rows >= H and cols >= 27 zeroed
    # bl_ref:  (1, 128)     linear.bias padded
    # out_ref: (BB, 128)    padded logits (written on last T-chunk only)
    # h_ref, c_ref: (BB, 128) persistent LSTM state scratch
    t_chunk = pl.program_id(1)
    tt, bb, e = x_ref.shape

    @pl.when(t_chunk == 0)
    def _():
        h_ref[...] = jnp.zeros_like(h_ref)
        c_ref[...] = jnp.zeros_like(c_ref)

    # Hoisted input projection + bias for the whole chunk: one big MXU matmul.
    xg = (jnp.dot(x_ref[...].reshape(tt * bb, e), wih_ref[...],
                  preferred_element_type=jnp.float32)
          + b_ref[...])                                    # (tt*bb, 512)

    # Loop-invariant loads hoisted out of the recurrence.
    lens = len_ref[...]                                    # (bb, 1) int32
    whh = whh_ref[...]                                     # (128, 512)
    t_base = t_chunk * tt

    h = h_ref[...]
    c = c_ref[...]
    # Fully unrolled recurrence over the chunk (tt is small & static).
    for t in range(tt):
        gates = xg[t * bb:(t + 1) * bb, :] + jnp.dot(
            h, whh, preferred_element_type=jnp.float32)    # (bb, 512)
        # Lane-aligned gate slices (PyTorch gate order i, f, g, o).
        i = jax.nn.sigmoid(gates[:, 0 * GATE_LANES:1 * GATE_LANES])
        f = jax.nn.sigmoid(gates[:, 1 * GATE_LANES:2 * GATE_LANES])
        g = jnp.tanh(gates[:, 2 * GATE_LANES:3 * GATE_LANES])
        o = jax.nn.sigmoid(gates[:, 3 * GATE_LANES:4 * GATE_LANES])
        c_new = f * c + i * g
        h_new = o * jnp.tanh(c_new)
        # Freeze state for padded timesteps (pack_padded_sequence + ht[-1]).
        mask = (t_base + t) < lens                         # (bb, 1)
        h = jnp.where(mask, h_new, h)
        c = jnp.where(mask, c_new, c)
    h_ref[...] = h
    c_ref[...] = c

    @pl.when(t_chunk == pl.num_programs(1) - 1)
    def _():
        out_ref[...] = (jnp.dot(h, wl_ref[...], preferred_element_type=jnp.float32)
                        + bl_ref[...])


def _pack_weights(params):
    """Pre-transpose and lane-pad the LSTM/Linear weights (gate-per-128-lanes)."""
    H = HIDDEN_DIM
    w_ih = params["w_ih"]                                  # (4H, E)
    w_hh = params["w_hh"]                                  # (4H, H)
    bias = params["b_ih"] + params["b_hh"]                 # (4H,)
    wih_p = jnp.zeros((EMBEDDING_DIM, GP), jnp.float32)
    whh_p = jnp.zeros((HP, GP), jnp.float32)
    b_p = jnp.zeros((1, GP), jnp.float32)
    for g in range(NUM_GATES):
        lo = g * GATE_LANES
        wih_p = wih_p.at[:, lo:lo + H].set(w_ih[g * H:(g + 1) * H, :].T)
        whh_p = whh_p.at[:H, lo:lo + H].set(w_hh[g * H:(g + 1) * H, :].T)
        b_p = b_p.at[0, lo:lo + H].set(bias[g * H:(g + 1) * H])
    wl_p = jnp.zeros((HP, CP), jnp.float32).at[:H, :NUM_CLASSES].set(params["w_lin"].T)
    bl_p = jnp.zeros((1, CP), jnp.float32).at[0, :NUM_CLASSES].set(params["b_lin"])
    return wih_p, whh_p, b_p, wl_p, bl_p


def rnn_forward(tokens, lengths, params):
    """tokens: (B, T) int32, lengths: (B,) int32 -> (B, 27) float32 logits."""
    B, T = tokens.shape
    # Glue: embedding gather (padding_idx=0 row is zero); Dropout(0.3) == id in eval.
    x = jnp.take(params["embeddings"], tokens, axis=0).astype(jnp.float32)  # (B,T,E)

    Bp = ((B + BB - 1) // BB) * BB
    Tp = ((T + TT_CHUNK - 1) // TT_CHUNK) * TT_CHUNK

    x_tm = jnp.transpose(x, (1, 0, 2))                          # (T, B, E)
    x_tm = jnp.pad(x_tm, ((0, Tp - T), (0, Bp - B), (0, 0)))    # (Tp, Bp, E)
    len2d = jnp.pad(lengths.astype(jnp.int32), (0, Bp - B)).reshape(Bp, 1)

    wih_p, whh_p, b_p, wl_p, bl_p = _pack_weights(params)

    nb, nt = Bp // BB, Tp // TT_CHUNK
    const2 = lambda b, t: (0, 0)

    out_p = pl.pallas_call(
        rnn_lstm_kernel,
        out_shape=jax.ShapeDtypeStruct((Bp, CP), jnp.float32),
        grid_spec=pltpu.PrefetchScalarGridSpec(
            num_scalar_prefetch=0,
            grid=(nb, nt),
            in_specs=[
                pl.BlockSpec((TT_CHUNK, BB, EMBEDDING_DIM), lambda b, t: (t, b, 0)),
                pl.BlockSpec((BB, 1), lambda b, t: (b, 0)),
                pl.BlockSpec((EMBEDDING_DIM, GP), const2),
                pl.BlockSpec((HP, GP), const2),
                pl.BlockSpec((1, GP), const2),
                pl.BlockSpec((HP, CP), const2),
                pl.BlockSpec((1, CP), const2),
            ],
            out_specs=pl.BlockSpec((BB, CP), lambda b, t: (b, 0)),
            scratch_shapes=[pltpu.VMEM((BB, HP), jnp.float32),
                            pltpu.VMEM((BB, HP), jnp.float32)],
        ),
        compiler_params=pltpu.CompilerParams(
            dimension_semantics=("parallel", "arbitrary")),
    )(x_tm, len2d, wih_p, whh_p, b_p, wl_p, bl_p)
    return out_p[:B, :NUM_CLASSES]


def rnn_forward_ref(tokens, lengths, params):
    """Pure-JAX reference (matches the PyTorch module in eval mode)."""
    H = HIDDEN_DIM
    B, T = tokens.shape
    x = jnp.take(params["embeddings"], tokens, axis=0).astype(jnp.float32)
    w_ih, w_hh = params["w_ih"], params["w_hh"]
    b = params["b_ih"] + params["b_hh"]
    h = jnp.zeros((B, H), jnp.float32)
    c = jnp.zeros((B, H), jnp.float32)
    for t in range(T):
        gates = x[:, t] @ w_ih.T + h @ w_hh.T + b
        i = jax.nn.sigmoid(gates[:, 0:H])
        f = jax.nn.sigmoid(gates[:, H:2 * H])
        g = jnp.tanh(gates[:, 2 * H:3 * H])
        o = jax.nn.sigmoid(gates[:, 3 * H:4 * H])
        c_new = f * c + i * g
        h_new = o * jnp.tanh(c_new)
        m = (t < lengths)[:, None]
        h = jnp.where(m, h_new, h)
        c = jnp.where(m, c_new, c)
    return h @ params["w_lin"].T + params["b_lin"]


def init_params(key):
    ks = jax.random.split(key, 6)
    emb = 0.02 * jax.random.normal(ks[0], (VOCAB_SIZE, EMBEDDING_DIM), jnp.float32)
    emb = emb.at[0].set(0.0)                 # padding_idx=0 row is zeros
    scale = 1.0 / (HIDDEN_DIM ** 0.5)
    w_ih = jax.random.uniform(ks[1], (4 * HIDDEN_DIM, EMBEDDING_DIM),
                              jnp.float32, -scale, scale)
    w_hh = jax.random.uniform(ks[2], (4 * HIDDEN_DIM, HIDDEN_DIM),
                              jnp.float32, -scale, scale)
    b_ih = jax.random.uniform(ks[3], (4 * HIDDEN_DIM,), jnp.float32, -scale, scale)
    b_hh = jax.random.uniform(ks[4], (4 * HIDDEN_DIM,), jnp.float32, -scale, scale)
    w_lin = jax.random.uniform(ks[5], (NUM_CLASSES, HIDDEN_DIM),
                               jnp.float32, -scale, scale)
    b_lin = jnp.zeros((NUM_CLASSES,), jnp.float32)
    return dict(embeddings=emb, w_ih=w_ih, w_hh=w_hh, b_ih=b_ih, b_hh=b_hh,
                w_lin=w_lin, b_lin=b_lin)


if __name__ == "__main__":
    key = jax.random.PRNGKey(0)
    pkey, tkey = jax.random.split(key)
    params = init_params(pkey)

    B, T = 2, 8
    lengths = jnp.array([8, 5], dtype=jnp.int32)
    tokens = jax.random.randint(tkey, (B, T), 1, VOCAB_SIZE, dtype=jnp.int32)
    # Zero-pad (padding_idx=0) beyond each sequence's length.
    pos = jnp.arange(T, dtype=jnp.int32)[None, :]
    tokens = jnp.where(pos < lengths[:, None], tokens, 0)

    out = rnn_forward(tokens, lengths, params)
    jax.block_until_ready(out)
    assert out.shape == (B, NUM_CLASSES) and out.dtype == jnp.float32

    ref = rnn_forward_ref(tokens, lengths, params)
    assert jnp.allclose(out, ref, rtol=1e-3, atol=1e-3), (out, ref)
    print("KERNEL_OK")
</pallas_src>

<mosaic_0001>
module attributes {stable_mosaic.version = 11 : i64} {
  func.func @rnn_lstm_kernel(%arg0: i32, %arg1: i32, %arg2: memref<4x8x100xf32, #tpu.memory_space<vmem>>, %arg3: memref<8x1xi32, #tpu.memory_space<vmem>>, %arg4: memref<100x512xf32, #tpu.memory_space<vmem>>, %arg5: memref<128x512xf32, #tpu.memory_space<vmem>>, %arg6: memref<1x512xf32, #tpu.memory_space<vmem>>, %arg7: memref<128x128xf32, #tpu.memory_space<vmem>>, %arg8: memref<1x128xf32, #tpu.memory_space<vmem>>, %arg9: memref<8x128xf32, #tpu.memory_space<vmem>>, %arg10: memref<8x128xf32, #tpu.memory_space<vmem>>, %arg11: memref<8x128xf32, #tpu.memory_space<vmem>>) attributes {dimension_semantics = [#tpu.dimension_semantics<parallel>, #tpu.dimension_semantics<arbitrary>], iteration_bounds = array<i64: 1, 2>, scalar_prefetch = 0 : i64, scratch_operands = 2 : i64, tpu.core_type = #tpu.core_type<tc>, window_params = [{transform_indices = @transform_0, window_bounds = array<i64: 4, 8, 100>}, {transform_indices = @transform_1, window_bounds = array<i64: 8, 1>}, {pipeline_mode = #tpu.pipeline_mode<synchronous>, transform_indices = @transform_2, window_bounds = array<i64: 100, 512>}, {pipeline_mode = #tpu.pipeline_mode<synchronous>, transform_indices = @transform_3, window_bounds = array<i64: 128, 512>}, {pipeline_mode = #tpu.pipeline_mode<synchronous>, transform_indices = @transform_4, window_bounds = array<i64: 1, 512>}, {pipeline_mode = #tpu.pipeline_mode<synchronous>, transform_indices = @transform_5, window_bounds = array<i64: 128, 128>}, {pipeline_mode = #tpu.pipeline_mode<synchronous>, transform_indices = @transform_6, window_bounds = array<i64: 1, 128>}, {transform_indices = @transform_7, window_bounds = array<i64: 8, 128>}]} {
    %c0_i32 = arith.constant 0 : i32
    %0 = arith.cmpi eq, %arg1, %c0_i32 : i32
    %1 = arith.extui %0 : i1 to i32
    %c0_i32_0 = arith.constant 0 : i32
    %2 = arith.cmpi ne, %1, %c0_i32_0 : i32
    scf.if %2 {
      %cst_38 = arith.constant 0.000000e+00 : f32
      %168 = vector.broadcast %cst_38 : f32 to vector<8x128xf32>
      %c0_39 = arith.constant 0 : index
      %c0_40 = arith.constant 0 : index
      %169 = vector.load %arg10[%c0_39, %c0_40] : memref<8x128xf32, #tpu.memory_space<vmem>>, vector<8x128xf32>
      tpu.vector_store %arg10[%c0_39, %c0_40], %168 {strides = array<i32>} : memref<8x128xf32, #tpu.memory_space<vmem>>, vector<8x128xf32>,
      %cst_41 = arith.constant 0.000000e+00 : f32
      %170 = vector.broadcast %cst_41 : f32 to vector<8x128xf32>
      %c0_42 = arith.constant 0 : index
      %c0_43 = arith.constant 0 : index
      %171 = vector.load %arg11[%c0_42, %c0_43] : memref<8x128xf32, #tpu.memory_space<vmem>>, vector<8x128xf32>
      tpu.vector_store %arg11[%c0_42, %c0_43], %170 {strides = array<i32>} : memref<8x128xf32, #tpu.memory_space<vmem>>, vector<8x128xf32>,
    } else {
    }
    %c0 = arith.constant 0 : index
    %c0_1 = arith.constant 0 : index
    %c0_2 = arith.constant 0 : index
    %3 = vector.load %arg2[%c0, %c0_1, %c0_2] : memref<4x8x100xf32, #tpu.memory_space<vmem>>, vector<4x8x100xf32>
    %4 = vector.shape_cast %3 : vector<4x8x100xf32> to vector<32x100xf32>
    %c0_3 = arith.constant 0 : index
    %c0_4 = arith.constant 0 : index
    %5 = vector.load %arg4[%c0_3, %c0_4] : memref<100x512xf32, #tpu.memory_space<vmem>>, vector<100x512xf32>
    %cst = arith.constant dense<0.000000e+00> : vector<32x512xf32>
    %6 = tpu.matmul %4, %5, %cst {dimension_numbers = #tpu.dot_dimension_numbers<[1], [0], [0], [1], [0, 0, 1, 1], [], []>} : vector<32x100xf32>, vector<100x512xf32>, vector<32x512xf32> -> vector<32x512xf32>
    %c0_5 = arith.constant 0 : index
    %c0_6 = arith.constant 0 : index
    %7 = vector.load %arg6[%c0_5, %c0_6] : memref<1x512xf32, #tpu.memory_space<vmem>>, vector<1x512xf32>
    %8 = vector.broadcast %7 : vector<1x512xf32> to vector<32x512xf32>
    %9 = arith.addf %6, %8 : vector<32x512xf32>
    %c0_7 = arith.constant 0 : index
    %c0_8 = arith.constant 0 : index
    %10 = vector.load %arg3[%c0_7, %c0_8] : memref<8x1xi32, #tpu.memory_space<vmem>>, vector<8x1xi32>
    %c0_9 = arith.constant 0 : index
    %c0_10 = arith.constant 0 : index
    %11 = vector.load %arg5[%c0_9, %c0_10] : memref<128x512xf32, #tpu.memory_space<vmem>>, vector<128x512xf32>
    %c4_i32 = arith.constant 4 : i32
    %12 = arith.muli %arg1, %c4_i32 : i32
    %c0_11 = arith.constant 0 : index
    %c0_12 = arith.constant 0 : index
    %13 = vector.load %arg10[%c0_11, %c0_12] : memref<8x128xf32, #tpu.memory_space<vmem>>, vector<8x128xf32>
    %c0_13 = arith.constant 0 : index
    %c0_14 = arith.constant 0 : index
    %14 = vector.load %arg11[%c0_13, %c0_14] : memref<8x128xf32, #tpu.memory_space<vmem>>, vector<8x128xf32>
    %15 = vector.extract_strided_slice %9 {offsets = [0, 0], sizes = [8, 512], strides = [1, 1]} : vector<32x512xf32> to vector<8x512xf32>
    %cst_15 = arith.constant dense<0.000000e+00> : vector<8x512xf32>
    %16 = tpu.matmul %13, %11, %cst_15 {dimension_numbers = #tpu.dot_dimension_numbers<[1], [0], [0], [1], [0, 0, 1, 1], [], []>} : vector<8x128xf32>, vector<128x512xf32>, vector<8x512xf32> -> vector<8x512xf32>
    %17 = arith.addf %15, %16 : vector<8x512xf32>
    %18 = vector.extract_strided_slice %17 {offsets = [0, 0], sizes = [8, 128], strides = [1, 1]} : vector<8x512xf32> to vector<8x128xf32>
    %19 = arith.negf %18 : vector<8x128xf32>
    %20 = math.exp %19 : vector<8x128xf32>
    %cst_16 = arith.constant 1.000000e+00 : f32
    %21 = vector.broadcast %cst_16 : f32 to vector<8x128xf32>
    %22 = arith.addf %21, %20 : vector<8x128xf32>
    %23 = arith.divf %21, %22 : vector<8x128xf32>
    %24 = vector.extract_strided_slice %17 {offsets = [0, 128], sizes = [8, 128], strides = [1, 1]} : vector<8x512xf32> to vector<8x128xf32>
    %25 = arith.negf %24 : vector<8x128xf32>
    %26 = math.exp %25 : vector<8x128xf32>
    %cst_17 = arith.constant 1.000000e+00 : f32
    %27 = vector.broadcast %cst_17 : f32 to vector<8x128xf32>
    %28 = arith.addf %27, %26 : vector<8x128xf32>
    %29 = arith.divf %27, %28 : vector<8x128xf32>
    %30 = vector.extract_strided_slice %17 {offsets = [0, 256], sizes = [8, 128], strides = [1, 1]} : vector<8x512xf32> to vector<8x128xf32>
    %31 = math.tanh %30 : vector<8x128xf32>
    %32 = vector.extract_strided_slice %17 {offsets = [0, 384], sizes = [8, 128], strides = [1, 1]} : vector<8x512xf32> to vector<8x128xf32>
    %33 = arith.negf %32 : vector<8x128xf32>
    %34 = math.exp %33 : vector<8x128xf32>
    %cst_18 = arith.constant 1.000000e+00 : f32
    %35 = vector.broadcast %cst_18 : f32 to vector<8x128xf32>
    %36 = arith.addf %35, %34 : vector<8x128xf32>
    %37 = arith.divf %35, %36 : vector<8x128xf32>
    %38 = arith.mulf %29, %14 : vector<8x128xf32>
    %39 = arith.mulf %23, %31 : vector<8x128xf32>
    %40 = arith.addf %38, %39 : vector<8x128xf32>
    %41 = math.tanh %40 : vector<8x128xf32>
    %42 = arith.mulf %37, %41 : vector<8x128xf32>
    %c0_i32_19 = arith.constant 0 : i32
    %43 = arith.addi %12, %c0_i32_19 : i32
    %44 = vector.broadcast %43 : i32 to vector<8x1xi32>
    %45 = arith.cmpi slt, %44, %10 : vector<8x1xi32>
    %46 = vector.shape_cast %45 : vector<8x1xi1> to vector<8x1xi1>
    %47 = vector.broadcast %46 : vector<8x1xi1> to vector<8x128xi1>
    %48 = arith.select %47, %42, %13 : vector<8x128xi1>, vector<8x128xf32>
    %49 = vector.shape_cast %45 : vector<8x1xi1> to vector<8x1xi1>
    %50 = vector.broadcast %49 : vector<8x1xi1> to vector<8x128xi1>
    %51 = arith.select %50, %40, %14 : vector<8x128xi1>, vector<8x128xf32>
    %52 = vector.extract_strided_slice %9 {offsets = [8, 0], sizes = [8, 512], strides = [1, 1]} : vector<32x512xf32> to vector<8x512xf32>
    %cst_20 = arith.constant dense<0.000000e+00> : vector<8x512xf32>
    %53 = tpu.matmul %48, %11, %cst_20 {dimension_numbers = #tpu.dot_dimension_numbers<[1], [0], [0], [1], [0, 0, 1, 1], [], []>} : vector<8x128xf32>, vector<128x512xf32>, vector<8x512xf32> -> vector<8x512xf32>
    %54 = arith.addf %52, %53 : vector<8x512xf32>
    %55 = vector.extract_strided_slice %54 {offsets = [0, 0], sizes = [8, 128], strides = [1, 1]} : vector<8x512xf32> to vector<8x128xf32>
    %56 = arith.negf %55 : vector<8x128xf32>
    %57 = math.exp %56 : vector<8x128xf32>
    %cst_21 = arith.constant 1.000000e+00 : f32
    %58 = vector.broadcast %cst_21 : f32 to vector<8x128xf32>
    %59 = arith.addf %58, %57 : vector<8x128xf32>
    %60 = arith.divf %58, %59 : vector<8x128xf32>
    %61 = vector.extract_strided_slice %54 {offsets = [0, 128], sizes = [8, 128], strides = [1, 1]} : vector<8x512xf32> to vector<8x128xf32>
    %62 = arith.negf %61 : vector<8x128xf32>
    %63 = math.exp %62 : vector<8x128xf32>
    %cst_22 = arith.constant 1.000000e+00 : f32
    %64 = vector.broadcast %cst_22 : f32 to vector<8x128xf32>
    %65 = arith.addf %64, %63 : vector<8x128xf32>
    %66 = arith.divf %64, %65 : vector<8x128xf32>
    %67 = vector.extract_strided_slice %54 {offsets = [0, 256], sizes = [8, 128], strides = [1, 1]} : vector<8x512xf32> to vector<8x128xf32>
    %68 = math.tanh %67 : vector<8x128xf32>
    %69 = vector.extract_strided_slice %54 {offsets = [0, 384], sizes = [8, 128], strides = [1, 1]} : vector<8x512xf32> to vector<8x128xf32>
    %70 = arith.negf %69 : vector<8x128xf32>
    %71 = math.exp %70 : vector<8x128xf32>
    %cst_23 = arith.constant 1.000000e+00 : f32
    %72 = vector.broadcast %cst_23 : f32 to vector<8x128xf32>
    %73 = arith.addf %72, %71 : vector<8x128xf32>
    %74 = arith.divf %72, %73 : vector<8x128xf32>
    %75 = arith.mulf %66, %51 : vector<8x128xf32>
    %76 = arith.mulf %60, %68 : vector<8x128xf32>
    %77 = arith.addf %75, %76 : vector<8x128xf32>
    %78 = math.tanh %77 : vector<8x128xf32>
    %79 = arith.mulf %74, %78 : vector<8x128xf32>
    %c1_i32 = arith.constant 1 : i32
    %80 = arith.addi %12, %c1_i32 : i32
    %81 = vector.broadcast %80 : i32 to vector<8x1xi32>
    %82 = arith.cmpi slt, %81, %10 : vector<8x1xi32>
    %83 = vector.shape_cast %82 : vector<8x1xi1> to vector<8x1xi1>
    %84 = vector.broadcast %83 : vector<8x1xi1> to vector<8x128xi1>
    %85 = arith.select %84, %79, %48 : vector<8x128xi1>, vector<8x128xf32>
    %86 = vector.shape_cast %82 : vector<8x1xi1> to vector<8x1xi1>
    %87 = vector.broadcast %86 : vector<8x1xi1> to vector<8x128xi1>
    %88 = arith.select %87, %77, %51 : vector<8x128xi1>, vector<8x128xf32>
    %89 = vector.extract_strided_slice %9 {offsets = [16, 0], sizes = [8, 512], strides = [1, 1]} : vector<32x512xf32> to vector<8x512xf32>
    %cst_24 = arith.constant dense<0.000000e+00> : vector<8x512xf32>
    %90 = tpu.matmul %85, %11, %cst_24 {dimension_numbers = #tpu.dot_dimension_numbers<[1], [0], [0], [1], [0, 0, 1, 1], [], []>} : vector<8x128xf32>, vector<128x512xf32>, vector<8x512xf32> -> vector<8x512xf32>
    %91 = arith.addf %89, %90 : vector<8x512xf32>
    %92 = vector.extract_strided_slice %91 {offsets = [0, 0], sizes = [8, 128], strides = [1, 1]} : vector<8x512xf32> to vector<8x128xf32>
    %93 = arith.negf %92 : vector<8x128xf32>
    %94 = math.exp %93 : vector<8x128xf32>
    %cst_25 = arith.constant 1.000000e+00 : f32
    %95 = vector.broadcast %cst_25 : f32 to vector<8x128xf32>
    %96 = arith.addf %95, %94 : vector<8x128xf32>
    %97 = arith.divf %95, %96 : vector<8x128xf32>
    %98 = vector.extract_strided_slice %91 {offsets = [0, 128], sizes = [8, 128], strides = [1, 1]} : vector<8x512xf32> to vector<8x128xf32>
    %99 = arith.negf %98 : vector<8x128xf32>
    %100 = math.exp %99 : vector<8x128xf32>
    %cst_26 = arith.constant 1.000000e+00 : f32
    %101 = vector.broadcast %cst_26 : f32 to vector<8x128xf32>
    %102 = arith.addf %101, %100 : vector<8x128xf32>
    %103 = arith.divf %101, %102 : vector<8x128xf32>
    %104 = vector.extract_strided_slice %91 {offsets = [0, 256], sizes = [8, 128], strides = [1, 1]} : vector<8x512xf32> to vector<8x128xf32>
    %105 = math.tanh %104 : vector<8x128xf32>
    %106 = vector.extract_strided_slice %91 {offsets = [0, 384], sizes = [8, 128], strides = [1, 1]} : vector<8x512xf32> to vector<8x128xf32>
    %107 = arith.negf %106 : vector<8x128xf32>
    %108 = math.exp %107 : vector<8x128xf32>
    %cst_27 = arith.constant 1.000000e+00 : f32
    %109 = vector.broadcast %cst_27 : f32 to vector<8x128xf32>
    %110 = arith.addf %109, %108 : vector<8x128xf32>
    %111 = arith.divf %109, %110 : vector<8x128xf32>
    %112 = arith.mulf %103, %88 : vector<8x128xf32>
    %113 = arith.mulf %97, %105 : vector<8x128xf32>
    %114 = arith.addf %112, %113 : vector<8x128xf32>
    %115 = math.tanh %114 : vector<8x128xf32>
    %116 = arith.mulf %111, %115 : vector<8x128xf32>
    %c2_i32 = arith.constant 2 : i32
    %117 = arith.addi %12, %c2_i32 : i32
    %118 = vector.broadcast %117 : i32 to vector<8x1xi32>
    %119 = arith.cmpi slt, %118, %10 : vector<8x1xi32>
    %120 = vector.shape_cast %119 : vector<8x1xi1> to vector<8x1xi1>
    %121 = vector.broadcast %120 : vector<8x1xi1> to vector<8x128xi1>
    %122 = arith.select %121, %116, %85 : vector<8x128xi1>, vector<8x128xf32>
    %123 = vector.shape_cast %119 : vector<8x1xi1> to vector<8x1xi1>
    %124 = vector.broadcast %123 : vector<8x1xi1> to vector<8x128xi1>
    %125 = arith.select %124, %114, %88 : vector<8x128xi1>, vector<8x128xf32>
    %126 = vector.extract_strided_slice %9 {offsets = [24, 0], sizes = [8, 512], strides = [1, 1]} : vector<32x512xf32> to vector<8x512xf32>
    %cst_28 = arith.constant dense<0.000000e+00> : vector<8x512xf32>
    %127 = tpu.matmul %122, %11, %cst_28 {dimension_numbers = #tpu.dot_dimension_numbers<[1], [0], [0], [1], [0, 0, 1, 1], [], []>} : vector<8x128xf32>, vector<128x512xf32>, vector<8x512xf32> -> vector<8x512xf32>
    %128 = arith.addf %126, %127 : vector<8x512xf32>
    %129 = vector.extract_strided_slice %128 {offsets = [0, 0], sizes = [8, 128], strides = [1, 1]} : vector<8x512xf32> to vector<8x128xf32>
    %130 = arith.negf %129 : vector<8x128xf32>
    %131 = math.exp %130 : vector<8x128xf32>
    %cst_29 = arith.constant 1.000000e+00 : f32
    %132 = vector.broadcast %cst_29 : f32 to vector<8x128xf32>
    %133 = arith.addf %132, %131 : vector<8x128xf32>
    %134 = arith.divf %132, %133 : vector<8x128xf32>
    %135 = vector.extract_strided_slice %128 {offsets = [0, 128], sizes = [8, 128], strides = [1, 1]} : vector<8x512xf32> to vector<8x128xf32>
    %136 = arith.negf %135 : vector<8x128xf32>
    %137 = math.exp %136 : vector<8x128xf32>
    %cst_30 = arith.constant 1.000000e+00 : f32
    %138 = vector.broadcast %cst_30 : f32 to vector<8x128xf32>
    %139 = arith.addf %138, %137 : vector<8x128xf32>
    %140 = arith.divf %138, %139 : vector<8x128xf32>
    %141 = vector.extract_strided_slice %128 {offsets = [0, 256], sizes = [8, 128], strides = [1, 1]} : vector<8x512xf32> to vector<8x128xf32>
    %142 = math.tanh %141 : vector<8x128xf32>
    %143 = vector.extract_strided_slice %128 {offsets = [0, 384], sizes = [8, 128], strides = [1, 1]} : vector<8x512xf32> to vector<8x128xf32>
    %144 = arith.negf %143 : vector<8x128xf32>
    %145 = math.exp %144 : vector<8x128xf32>
    %cst_31 = arith.constant 1.000000e+00 : f32
    %146 = vector.broadcast %cst_31 : f32 to vector<8x128xf32>
    %147 = arith.addf %146, %145 : vector<8x128xf32>
    %148 = arith.divf %146, %147 : vector<8x128xf32>
    %149 = arith.mulf %140, %125 : vector<8x128xf32>
    %150 = arith.mulf %134, %142 : vector<8x128xf32>
    %151 = arith.addf %149, %150 : vector<8x128xf32>
    %152 = math.tanh %151 : vector<8x128xf32>
    %153 = arith.mulf %148, %152 : vector<8x128xf32>
    %c3_i32 = arith.constant 3 : i32
    %154 = arith.addi %12, %c3_i32 : i32
    %155 = vector.broadcast %154 : i32 to vector<8x1xi32>
    %156 = arith.cmpi slt, %155, %10 : vector<8x1xi32>
    %157 = vector.shape_cast %156 : vector<8x1xi1> to vector<8x1xi1>
    %158 = vector.broadcast %157 : vector<8x1xi1> to vector<8x128xi1>
    %159 = arith.select %158, %153, %122 : vector<8x128xi1>, vector<8x128xf32>
    %160 = vector.shape_cast %156 : vector<8x1xi1> to vector<8x1xi1>
    %161 = vector.broadcast %160 : vector<8x1xi1> to vector<8x128xi1>
    %162 = arith.select %161, %151, %125 : vector<8x128xi1>, vector<8x128xf32>
    %c0_32 = arith.constant 0 : index
    %c0_33 = arith.constant 0 : index
    %163 = vector.load %arg10[%c0_32, %c0_33] : memref<8x128xf32, #tpu.memory_space<vmem>>, vector<8x128xf32>
    tpu.vector_store %arg10[%c0_32, %c0_33], %159 {strides = array<i32>} : memref<8x128xf32, #tpu.memory_space<vmem>>, vector<8x128xf32>,
    %c0_34 = arith.constant 0 : index
    %c0_35 = arith.constant 0 : index
    %164 = vector.load %arg11[%c0_34, %c0_35] : memref<8x128xf32, #tpu.memory_space<vmem>>, vector<8x128xf32>
    tpu.vector_store %arg11[%c0_34, %c0_35], %162 {strides = array<i32>} : memref<8x128xf32, #tpu.memory_space<vmem>>, vector<8x128xf32>,
    %c1_i32_36 = arith.constant 1 : i32
    %165 = arith.cmpi eq, %arg1, %c1_i32_36 : i32
    %166 = arith.extui %165 : i1 to i32
    %c0_i32_37 = arith.constant 0 : i32
    %167 = arith.cmpi ne, %166, %c0_i32_37 : i32
    scf.if %167 {
      %c0_38 = arith.constant 0 : index
      %c0_39 = arith.constant 0 : index
      %168 = vector.load %arg7[%c0_38, %c0_39] : memref<128x128xf32, #tpu.memory_space<vmem>>, vector<128x128xf32>
      %cst_40 = arith.constant dense<0.000000e+00> : vector<8x128xf32>
      %169 = tpu.matmul %159, %168, %cst_40 {dimension_numbers = #tpu.dot_dimension_numbers<[1], [0], [0], [1], [0, 0, 1, 1], [], []>} : vector<8x128xf32>, vector<128x128xf32>, vector<8x128xf32> -> vector<8x128xf32>
      %c0_41 = arith.constant 0 : index
      %c0_42 = arith.constant 0 : index
      %170 = vector.load %arg8[%c0_41, %c0_42] : memref<1x128xf32, #tpu.memory_space<vmem>>, vector<1x128xf32>
      %171 = vector.broadcast %170 : vector<1x128xf32> to vector<8x128xf32>
      %172 = arith.addf %169, %171 : vector<8x128xf32>
      %c0_43 = arith.constant 0 : index
      %c0_44 = arith.constant 0 : index
      %173 = vector.load %arg9[%c0_43, %c0_44] : memref<8x128xf32, #tpu.memory_space<vmem>>, vector<8x128xf32>
      tpu.vector_store %arg9[%c0_43, %c0_44], %172 {strides = array<i32>} : memref<8x128xf32, #tpu.memory_space<vmem>>, vector<8x128xf32>,
    } else {
    }
    return
  }
  func.func @transform_0(%arg0: i32, %arg1: i32) -> (i32, i32, i32) {
    %c0_i32 = arith.constant 0 : i32
    %c0_i32_0 = arith.constant 0 : i32
    return %arg1, %arg0, %c0_i32 : i32, i32, i32
  }
  func.func @transform_1(%arg0: i32, %arg1: i32) -> (i32, i32) {
    %c0_i32 = arith.constant 0 : i32
    %c0_i32_0 = arith.constant 0 : i32
    return %arg0, %c0_i32 : i32, i32
  }
  func.func @transform_2(%arg0: i32, %arg1: i32) -> (i32, i32) {
    %c0_i32 = arith.constant 0 : i32
    %c0_i32_0 = arith.constant 0 : i32
    %c0_i32_1 = arith.constant 0 : i32
    return %c0_i32, %c0_i32_0 : i32, i32
  }
  func.func @transform_3(%arg0: i32, %arg1: i32) -> (i32, i32) {
    %c0_i32 = arith.constant 0 : i32
    %c0_i32_0 = arith.constant 0 : i32
    %c0_i32_1 = arith.constant 0 : i32
    return %c0_i32, %c0_i32_0 : i32, i32
  }
  func.func @transform_4(%arg0: i32, %arg1: i32) -> (i32, i32) {
    %c0_i32 = arith.constant 0 : i32
    %c0_i32_0 = arith.constant 0 : i32
    %c0_i32_1 = arith.constant 0 : i32
    return %c0_i32, %c0_i32_0 : i32, i32
  }
  func.func @transform_5(%arg0: i32, %arg1: i32) -> (i32, i32) {
    %c0_i32 = arith.constant 0 : i32
    %c0_i32_0 = arith.constant 0 : i32
    %c0_i32_1 = arith.constant 0 : i32
    return %c0_i32, %c0_i32_0 : i32, i32
  }
  func.func @transform_6(%arg0: i32, %arg1: i32) -> (i32, i32) {
    %c0_i32 = arith.constant 0 : i32
    %c0_i32_0 = arith.constant 0 : i32
    %c0_i32_1 = arith.constant 0 : i32
    return %c0_i32, %c0_i32_0 : i32, i32
  }
  func.func @transform_7(%arg0: i32, %arg1: i32) -> (i32, i32) {
    %c0_i32 = arith.constant 0 : i32
    %c0_i32_0 = arith.constant 0 : i32
    return %arg0, %c0_i32 : i32, i32
  }
}

</mosaic_0001>

<llo_original>
// kernel: tpu_custom_call.1
$region0: #{tpu_custom_call.1}
  #allocation0 [shape = 'u32[]', space=smem, size = 0x4, offset = 0x4, fixed_abs, tag = 'smem constant byte address 0x4 - core index']
  #allocation1 [shape = 'u32[144,128]{1,0:T(1,128)}', space=vmem, size = 0x12000, scoped, tag = 'internal scratch']
  #allocation2 [shape = 'f32[8,128]{1,0:T(8,128)}', space=vmem, size = 0x1000, scoped, tag = 'scratch operand']
  #allocation3 [shape = 'f32[8,128]{1,0:T(8,128)}', space=vmem, size = 0x1000, scoped, tag = 'scratch operand']
  %s0 = inlined_call_operand.hbm [shape: f32[8,8,100], index: 0, kind: input, shape index: {}]
  %s1 = inlined_call_operand.vmem [shape: s32[8,1], index: 1, kind: input, shape index: {}]
  %s2 = inlined_call_operand.hbm [shape: f32[100,512], index: 2, kind: input, shape index: {}]
  %s3 = inlined_call_operand.hbm [shape: f32[128,512], index: 3, kind: input, shape index: {}]
  %s4 = inlined_call_operand.vmem [shape: f32[1,512], index: 4, kind: input, shape index: {}]
  %s5 = inlined_call_operand.hbm [shape: f32[128,128], index: 5, kind: input, shape index: {}]
  %s6 = inlined_call_operand.vmem [shape: f32[1,128], index: 6, kind: input, shape index: {}]
  %s7 = inlined_call_operand.hbm [shape: f32[8,128], index: 7, kind: output, shape index: {}]
  %s8 = sld [smem:[#allocation0]]
  $region85: #{tpu_custom_call.1} parent=0
    _
  %s10 = ssub.s32 1, %s8
  %s11 = scalar_select 0, %s10, %s8
  $region1: #{tpu_custom_call.1} parent=0
    #allocation4 [shape = 'u8[32768]{0}', space=vmem, size = 0x8000, scoped, tag = 'input window, operand 0']
    #allocation5 [shape = 's32[2]{0}', space=sflag, size = 0x8, scoped, tag = 'scoped memory for tpu_custom_call.1']
    #allocation6 [shape = 's32[2]{0}', space=sflag, size = 0x8, scoped, tag = 'scoped memory for tpu_custom_call.1']
    #allocation7 [shape = 'u8[212992]{0}', space=vmem, size = 0x34000, scoped, tag = 'input window, operand 2, single buffered']
    #allocation8 [shape = 's32[1]{0}', space=sflag, size = 0x4, scoped, tag = 'scoped memory for tpu_custom_call.1']
    #allocation9 [shape = 'u8[262144]{0}', space=vmem, size = 0x40000, scoped, tag = 'input window, operand 3, single buffered']
    #allocation10 [shape = 'u8[65536]{0}', space=vmem, size = 0x10000, scoped, tag = 'input window, operand 5, single buffered']
    #allocation11 [shape = 's32[1]{0}', space=sflag, size = 0x4, scoped, tag = 'scoped memory for tpu_custom_call.1']
    #allocation12 [shape = 'u8[4096]{0}', space=vmem, size = 0x1000, scoped, tag = 'output window, operand 0, single buffered']
    %12 = vsyncpa [#allocation5], 0
    %s13 = scalar_lea.sflag [#allocation5], 1
    %14 = vsyncpa %s13, 0
    %15 = vsyncpa [#allocation8], 0
    %16 = vsyncpa [#allocation11], 0
    %17 = vsyncpa [#allocation6], 0
    loop: start=0, step=1, limit=4
    $region2: #{tpu_custom_call.1} parent=1 // loop_pre_header
      _
    $region3: #{tpu_custom_call.1} parent=1 // loop_header
      %s19 = sphi 0, %s23
      %p20 = scmp.ge.s32.totalorder %s19, 4
      %s26 = sphi 0, %s38
      %s27 = sphi 0, %s34
      %s28 = sphi 0, %s26
      %s29 = sphi 0, %s27
      %s30 = sphi 0, %s28
      %s31 = sphi 0, %s29
      %s43 = sphi 0, %s45
      %s46 = sphi 0, %s43
      %s47 = sphi 0, %s46
      %s63 = sphi 0, %s47
      %s69 = sphi 0, %s71
      %s72 = sphi 0, %s69
      %s73 = sphi 0, %s72
      %s89 = sphi 0, %s73
      %s93 = sphi 0, %s93
      %s95 = sphi 0, %s93
      %s96 = sphi 0, %s95
      %s110 = sphi 0, %s96
      %s114 = sphi 0, %s114
      %s116 = sphi 0, %s114
      %s117 = sphi 0, %s116
      %s131 = sphi 0, %s117
      %s135 = sphi 0, %s135
      %s137 = sphi 0, %s135
      %s138 = sphi 0, %s137
      %s152 = sphi 0, %s138
      %s156 = sphi 0, %s156
      %s158 = sphi 0, %s156
      %s159 = sphi 0, %s158
      %s173 = sphi 0, %s159
      %s177 = sphi 0, %s177
      %s179 = sphi 0, %s177
      %s180 = sphi 0, %s179
      %s194 = sphi 0, %s180
      %s200 = sphi 0, %s202
      %s203 = sphi 0, %s200
      %s204 = sphi 0, %s203
      %s220 = sphi 0, %s204
    $region4: #{tpu_custom_call.1} parent=1 // loop_header_branch
      %22 = sbr.rel (%p20) target = $region8
    $region5: #{tpu_custom_call.1} parent=1 // loop_body
      %s24 = ssub.s32 %s19, 1
      %s25 = ssub.s32 %s19, 2
      %s32 = sadd.s32 1, %s27
      %p33 = scmp.ge.s32.totalorder %s32, 2
      %s34 = scalar_select %p33, 0, %s32
      %s35 = sadd.s32 1, %s26
      %s36 = scalar_select %p33, %s35, %s26
      %p37 = scmp.ge.s32.totalorder %s36, 1
      %s38 = scalar_select %p37, 0, %s36
      %s39 = ssub.s32 %s27, %s34
      %s40 = ssub.s32 %s26, %s38
      %s41 = sor.u32 %s39, %s40
      %p42 = scmp.eq.s32.totalorder %s41, 0
      %s44 = sadd.s32 %s43, 1
      %s45 = scalar_select %p42, %s43, %s44
      %p48 = pneg %p42
      %p49 = scmp.eq.s32.totalorder %s19, 1
      %p50 = por %p48, %p49
      %p51 = scmp.ne.s32.totalorder %s43, %s46
      %p52 = scmp.eq.s32.totalorder %s19, 0
      %p53 = por %p51, %p52
      %p54 = scmp.ne.s32.totalorder %s43, %s46
      %p55 = scmp.eq.s32.totalorder %s24, 1
      %p56 = por %p54, %p55
      %p57 = scmp.ne.s32.totalorder %s46, %s47
      %p58 = scmp.eq.s32.totalorder %s24, 0
      %p59 = por %p57, %p58
      %p60 = scmp.ne.s32.totalorder %s46, %s47
      %p61 = scmp.eq.s32.totalorder %s25, 1
      %p62 = por %p60, %p61
      %p64 = scmp.ne.s32.totalorder %s47, %s63
      %p65 = scmp.eq.s32.totalorder %s25, 0
      %p66 = por %p64, %p65
      %s67 = ssub.s32 %s26, %s38
      %p68 = scmp.eq.s32.totalorder %s67, 0
      %s70 = sadd.s32 %s69, 1
      %s71 = scalar_select %p68, %s69, %s70
      %p74 = pneg %p68
      %p75 = scmp.eq.s32.totalorder %s19, 1
      %p76 = por %p74, %p75
      %p77 = scmp.ne.s32.totalorder %s69, %s72
      %p78 = scmp.eq.s32.totalorder %s19, 0
      %p79 = por %p77, %p78
      %p80 = scmp.ne.s32.totalorder %s69, %s72
      %p81 = scmp.eq.s32.totalorder %s24, 1
      %p82 = por %p80, %p81
      %p83 = scmp.ne.s32.totalorder %s72, %s73
      %p84 = scmp.eq.s32.totalorder %s24, 0
      %p85 = por %p83, %p84
      %p86 = scmp.ne.s32.totalorder %s72, %s73
      %p87 = scmp.eq.s32.totalorder %s25, 1
      %p88 = por %p86, %p87
      %p90 = scmp.ne.s32.totalorder %s73, %s89
      %p91 = scmp.eq.s32.totalorder %s25, 0
      %p92 = por %p90, %p91
      %s94 = sadd.s32 %s93, 1
      %p97 = scmp.eq.s32.totalorder %s19, 1
      %p98 = scmp.ne.s32.totalorder %s93, %s95
      %p99 = scmp.eq.s32.totalorder %s19, 0
      %p100 = por %p98, %p99
      %p101 = scmp.ne.s32.totalorder %s93, %s95
      %p102 = scmp.eq.s32.totalorder %s24, 1
      %p103 = por %p101, %p102
      %p104 = scmp.ne.s32.totalorder %s95, %s96
      %p105 = scmp.eq.s32.totalorder %s24, 0
      %p106 = por %p104, %p105
      %p107 = scmp.ne.s32.totalorder %s95, %s96
      %p108 = scmp.eq.s32.totalorder %s25, 1
      %p109 = por %p107, %p108
      %p111 = scmp.ne.s32.totalorder %s96, %s110
      %p112 = scmp.eq.s32.totalorder %s25, 0
      %p113 = por %p111, %p112
      %s115 = sadd.s32 %s114, 1
      %p118 = scmp.eq.s32.totalorder %s19, 1
      %p119 = scmp.ne.s32.totalorder %s114, %s116
      %p120 = scmp.eq.s32.totalorder %s19, 0
      %p121 = por %p119, %p120
      %p122 = scmp.ne.s32.totalorder %s114, %s116
      %p123 = scmp.eq.s32.totalorder %s24, 1
      %p124 = por %p122, %p123
      %p125 = scmp.ne.s32.totalorder %s116, %s117
      %p126 = scmp.eq.s32.totalorder %s24, 0
      %p127 = por %p125, %p126
      %p128 = scmp.ne.s32.totalorder %s116, %s117
      %p129 = scmp.eq.s32.totalorder %s25, 1
      %p130 = por %p128, %p129
      %p132 = scmp.ne.s32.totalorder %s117, %s131
      %p133 = scmp.eq.s32.totalorder %s25, 0
      %p134 = por %p132, %p133
      %s136 = sadd.s32 %s135, 1
      %p139 = scmp.eq.s32.totalorder %s19, 1
      %p140 = scmp.ne.s32.totalorder %s135, %s137
      %p141 = scmp.eq.s32.totalorder %s19, 0
      %p142 = por %p140, %p141
      %p143 = scmp.ne.s32.totalorder %s135, %s137
      %p144 = scmp.eq.s32.totalorder %s24, 1
      %p145 = por %p143, %p144
      %p146 = scmp.ne.s32.totalorder %s137, %s138
      %p147 = scmp.eq.s32.totalorder %s24, 0
      %p148 = por %p146, %p147
      %p149 = scmp.ne.s32.totalorder %s137, %s138
      %p150 = scmp.eq.s32.totalorder %s25, 1
      %p151 = por %p149, %p150
      %p153 = scmp.ne.s32.totalorder %s138, %s152
      %p154 = scmp.eq.s32.totalorder %s25, 0
      %p155 = por %p153, %p154
      %s157 = sadd.s32 %s156, 1
      %p160 = scmp.eq.s32.totalorder %s19, 1
      %p161 = scmp.ne.s32.totalorder %s156, %s158
      %p162 = scmp.eq.s32.totalorder %s19, 0
      %p163 = por %p161, %p162
      %p164 = scmp.ne.s32.totalorder %s156, %s158
      %p165 = scmp.eq.s32.totalorder %s24, 1
      %p166 = por %p164, %p165
      %p167 = scmp.ne.s32.totalorder %s158, %s159
      %p168 = scmp.eq.s32.totalorder %s24, 0
      %p169 = por %p167, %p168
      %p170 = scmp.ne.s32.totalorder %s158, %s159
      %p171 = scmp.eq.s32.totalorder %s25, 1
      %p172 = por %p170, %p171
      %p174 = scmp.ne.s32.totalorder %s159, %s173
      %p175 = scmp.eq.s32.totalorder %s25, 0
      %p176 = por %p174, %p175
      %s178 = sadd.s32 %s177, 1
      %p181 = scmp.eq.s32.totalorder %s19, 1
      %p182 = scmp.ne.s32.totalorder %s177, %s179
      %p183 = scmp.eq.s32.totalorder %s19, 0
      %p184 = por %p182, %p183
      %p185 = scmp.ne.s32.totalorder %s177, %s179
      %p186 = scmp.eq.s32.totalorder %s24, 1
      %p187 = por %p185, %p186
      %p188 = scmp.ne.s32.totalorder %s179, %s180
      %p189 = scmp.eq.s32.totalorder %s24, 0
      %p190 = por %p188, %p189
      %p191 = scmp.ne.s32.totalorder %s179, %s180
      %p192 = scmp.eq.s32.totalorder %s25, 1
      %p193 = por %p191, %p192
      %p195 = scmp.ne.s32.totalorder %s180, %s194
      %p196 = scmp.eq.s32.totalorder %s25, 0
      %p197 = por %p195, %p196
      %s198 = ssub.s32 %s26, %s38
      %p199 = scmp.eq.s32.totalorder %s198, 0
      %s201 = sadd.s32 %s200, 1
      %s202 = scalar_select %p199, %s200, %s201
      %p205 = pneg %p199
      %p206 = scmp.eq.s32.totalorder %s19, 1
      %p207 = por %p205, %p206
      %p208 = scmp.ne.s32.totalorder %s200, %s203
      %p209 = scmp.eq.s32.totalorder %s19, 0
      %p210 = por %p208, %p209
      %p211 = scmp.ne.s32.totalorder %s200, %s203
      %p212 = scmp.eq.s32.totalorder %s24, 1
      %p213 = por %p211, %p212
      %p214 = scmp.ne.s32.totalorder %s203, %s204
      %p215 = scmp.eq.s32.totalorder %s24, 0
      %p216 = por %p214, %p215
      %p217 = scmp.ne.s32.totalorder %s203, %s204
      %p218 = scmp.eq.s32.totalorder %s25, 1
      %p219 = por %p217, %p218
      %p221 = scmp.ne.s32.totalorder %s204, %s220
      %p222 = scmp.eq.s32.totalorder %s25, 0
      %p223 = por %p221, %p222
      %p224 = scmp.le.s32.totalorder 1, %s19
      %p225 = scmp.lt.s32.totalorder %s19, 3
      %p226 = pnand %p224, %p225
      %p227 = pneg %p226
      // Predicated region
      $region9: #{tpu_custom_call.1} parent=5 // pred_check
        _
      $region10: #{tpu_custom_call.1} parent=5 // pred_check_branch
        %229 = sbr.rel (%p226) target = $region12
      $region11: #{tpu_custom_call.1} parent=5 // pred_region
        %s230 = ssub.s32 %s19, 1
        // Predicated region
        $region13: #{tpu_custom_call.1} parent=11 // pred_check
          %p231 = pneg %p85
        $region14: #{tpu_custom_call.1} parent=11 // pred_check_branch
          %233 = sbr.rel (%p231) target = $region16
        $region15: #{tpu_custom_call.1} parent=11 // pred_region
          %p234 = scmp.lt.s32.totalorder %s28, 0
          %s235 = scalar_select %p234, %s28, 0
          %s236 = smul.addr %s235, 8
          %s237 = scalar_lea.vmem %s1, %s236
        $region16: #{tpu_custom_call.1} parent=11 // pred_fallthru
          _
        // Predicated region
        $region17: #{tpu_custom_call.1} parent=11 // pred_check
          %p238 = pneg %p106
        $region18: #{tpu_custom_call.1} parent=11 // pred_check_branch
          %240 = sbr.rel (%p238) target = $region20
        $region19: #{tpu_custom_call.1} parent=11 // pred_region
          %s242 = ssub.s32 6656, 6656
          %243 = vsyncadd [#allocation8], %s242
          %s244 = sshll.u32 [#allocation7], 4
          %s245 = int_to_ptr.vmem [resolvable:$true] %s244
          %250 = dma.hbm_to_vmem [thread:$0]  %s2, 6656, %s245, [#allocation8], 512, 512, 32
        $region20: #{tpu_custom_call.1} parent=11 // pred_fallthru
          _
        // Predicated region
        $region21: #{tpu_custom_call.1} parent=11 // pred_check
          %p251 = pneg %p127
        $region22: #{tpu_custom_call.1} parent=11 // pred_check_branch
          %253 = sbr.rel (%p251) target = $region24
        $region23: #{tpu_custom_call.1} parent=11 // pred_region
          %s255 = ssub.s32 8192, 8192
          %256 = vsyncadd [#allocation8], %s255
          %s257 = sshll.u32 [#allocation9], 4
          %s258 = int_to_ptr.vmem [resolvable:$true] %s257
          %263 = dma.hbm_to_vmem [thread:$0]  %s3, 8192, %s258, [#allocation8], 512, 512, 32
        $region24: #{tpu_custom_call.1} parent=11 // pred_fallthru
          _
        // Predicated region
        $region25: #{tpu_custom_call.1} parent=11 // pred_check
          %p264 = pneg %p148
        $region26: #{tpu_custom_call.1} parent=11 // pred_check_branch
          %266 = sbr.rel (%p264) target = $region28
        $region27: #{tpu_custom_call.1} parent=11 // pred_region
          _
        $region28: #{tpu_custom_call.1} parent=11 // pred_fallthru
          _
        // Predicated region
        $region29: #{tpu_custom_call.1} parent=11 // pred_check
          %p267 = pneg %p169
        $region30: #{tpu_custom_call.1} parent=11 // pred_check_branch
          %269 = sbr.rel (%p267) target = $region32
        $region31: #{tpu_custom_call.1} parent=11 // pred_region
          %s271 = ssub.s32 2048, 2048
          %272 = vsyncadd [#allocation11], %s271
          %s273 = sshll.u32 [#allocation10], 4
          %s274 = int_to_ptr.vmem [resolvable:$true] %s273
          %279 = dma.hbm_to_vmem [thread:$0]  %s5, 2048, %s274, [#allocation11], 128, 128, 8
        $region32: #{tpu_custom_call.1} parent=11 // pred_fallthru
          _
        // Predicated region
        $region33: #{tpu_custom_call.1} parent=11 // pred_check
          %p280 = pneg %p190
        $region34: #{tpu_custom_call.1} parent=11 // pred_check_branch
          %282 = sbr.rel (%p280) target = $region36
        $region35: #{tpu_custom_call.1} parent=11 // pred_region
          _
        $region36: #{tpu_custom_call.1} parent=11 // pred_fallthru
          _
      $region12: #{tpu_custom_call.1} parent=5 // pred_fallthru
        _
      %p283 = scmp.lt.s32.totalorder %s19, 2
      // Predicated region
      $region37: #{tpu_custom_call.1} parent=5 // pred_check
        %p284 = pneg %p283
      $region38: #{tpu_custom_call.1} parent=5 // pred_check_branch
        %286 = sbr.rel (%p284) target = $region40
      $region39: #{tpu_custom_call.1} parent=5 // pred_region
        // Predicated region
        $region41: #{tpu_custom_call.1} parent=39 // pred_check
          %p287 = pneg %p53
        $region42: #{tpu_custom_call.1} parent=39 // pred_check_branch
          %289 = sbr.rel (%p287) target = $region44
        $region43: #{tpu_custom_call.1} parent=39 // pred_region
          %s290 = sand.u32 %s43, 1
          %s291 = scalar_lea.sflag [#allocation5], %s290
          %s292 = sand.u32 %s43, 1
          %s293 = smul.addr %s292, 32
          %s294 = scalar_lea.vmem [#allocation4], %s293
          %s295 = smul.u32 4, %s27
          %s297 = ssub.s32 512, 512
          %298 = vsyncadd %s291, %s297
          %s299 = sadd.s32 %s26, %s295
          %s300 = smul.addr %s299, 128
          %s301 = scalar_lea.hbm %s0, %s300
          %s302 = sshll.u32 %s294, 4
          %s303 = int_to_ptr.vmem [resolvable:$true] %s302
          %308 = dma.hbm_to_vmem [thread:$0]  %s301, 512, %s303, %s291, 128, 128, 8
        $region44: #{tpu_custom_call.1} parent=39 // pred_fallthru
          _
      $region40: #{tpu_custom_call.1} parent=5 // pred_fallthru
        _
      %p309 = scmp.le.s32.totalorder 1, %s19
      %p310 = scmp.lt.s32.totalorder %s19, 3
      %p311 = pnand %p309, %p310
      %p312 = pneg %p311
      // Predicated region
      $region45: #{tpu_custom_call.1} parent=5 // pred_check
        _
      $region46: #{tpu_custom_call.1} parent=5 // pred_check_branch
        %314 = sbr.rel (%p311) target = $region48
      $region47: #{tpu_custom_call.1} parent=5 // pred_region
        %s315 = ssub.s32 %s19, 1
        %s316 = sand.u32 %s46, 1
        %s317 = scalar_lea.sflag [#allocation5], %s316
        %s318 = sand.u32 %s46, 1
        %s319 = smul.addr %s318, 32
        %s320 = scalar_lea.vmem [#allocation4], %s319
        // Predicated region
        $region49: #{tpu_custom_call.1} parent=47 // pred_check
          %p321 = pneg %p59
        $region50: #{tpu_custom_call.1} parent=47 // pred_check_branch
          %323 = sbr.rel (%p321) target = $region52
        $region51: #{tpu_custom_call.1} parent=47 // pred_region
          %324 = dma.done %s317, 512
        $region52: #{tpu_custom_call.1} parent=47 // pred_fallthru
          _
        // Predicated region
        $region53: #{tpu_custom_call.1} parent=47 // pred_check
          %p325 = pneg %p106
        $region54: #{tpu_custom_call.1} parent=47 // pred_check_branch
          %327 = sbr.rel (%p325) target = $region56
        $region55: #{tpu_custom_call.1} parent=47 // pred_region
          %328 = dma.done [#allocation8], 6656
        $region56: #{tpu_custom_call.1} parent=47 // pred_fallthru
          _
        // Predicated region
        $region57: #{tpu_custom_call.1} parent=47 // pred_check
          %p329 = pneg %p127
        $region58: #{tpu_custom_call.1} parent=47 // pred_check_branch
          %331 = sbr.rel (%p329) target = $region60
        $region59: #{tpu_custom_call.1} parent=47 // pred_region
          %332 = dma.done [#allocation8], 8192
        $region60: #{tpu_custom_call.1} parent=47 // pred_fallthru
          _
        // Predicated region
        $region61: #{tpu_custom_call.1} parent=47 // pred_check
          %p333 = pneg %p169
        $region62: #{tpu_custom_call.1} parent=47 // pred_check_branch
          %335 = sbr.rel (%p333) target = $region64
        $region63: #{tpu_custom_call.1} parent=47 // pred_region
          %336 = dma.done [#allocation11], 2048
        $region64: #{tpu_custom_call.1} parent=47 // pred_fallthru
          _
        %s337 = sand.u32 %s46, 1
        %s338 = scalar_lea.sflag [#allocation5], %s337
        %s339 = sand.u32 %s46, 1
        %s340 = smul.addr %s339, 32
        %s341 = scalar_lea.vmem [#allocation4], %s340
        %p342 = pneg %p59
        %p343 = pneg %p56
        %p344 = scmp.lt.s32.totalorder %s28, 0
        %s345 = scalar_select %p344, %s28, 0
        %s346 = smul.addr %s345, 8
        %s347 = scalar_lea.vmem %s1, %s346
        %p348 = pneg %p85
        %p349 = pneg %p82
        %p350 = pneg %p106
        %p351 = pneg %p103
        %p352 = pneg %p127
        %p353 = pneg %p124
        %p354 = pneg %p148
        %p355 = pneg %p145
        %p356 = pneg %p169
        %p357 = pneg %p166
        %p358 = pneg %p190
        %p359 = pneg %p187
        %p360 = pneg %p216
        %p361 = pneg %p213
        %s362 = smul.u32 4, %s29
        %p363 = scmp.lt.s32.totalorder %s28, 0
        %s364 = scalar_select %p363, %s28, 0
        %s365 = smul.addr %s364, 8
        %s366 = scalar_lea.vmem %s1, %s365
        %p367 = scmp.eq.s32.totalorder %s29, 0
        // Predicated region
        $region65: #{tpu_custom_call.1} parent=47 // pred_check
          %p368 = pneg %p367
        $region66: #{tpu_custom_call.1} parent=47 // pred_check_branch
          %370 = sbr.rel (%p368) target = $region68
        $region67: #{tpu_custom_call.1} parent=47 // pred_region
          %371 = vst [vmem:[#allocation2] sm:$0xff] 0.0
          %372 = vst [vmem:[#allocation3] sm:$0xff] 0.0
        $region68: #{tpu_custom_call.1} parent=47 // pred_fallthru
          _
        %v373 = vld [vmem:[%s320] sm:$0xff]
        %v374 = vld [vmem:[%s320 + $0x8] sm:$0xff]
        %v375 = vld [vmem:[%s320 + $0x10] sm:$0xff]
        %v376 = vld [vmem:[%s320 + $0x18] sm:$0xff]
        %v377 = vld [vmem:[#allocation7] sm:$0xff]
        %v378 = vld [vmem:[#allocation7 + $0x8] sm:$0xff]
        %v379 = vld [vmem:[#allocation7 + $0x10] sm:$0xff]
        %v380 = vld [vmem:[#allocation7 + $0x18] sm:$0xff]
        %v381 = vld [vmem:[#allocation7 + $0x20] sm:$0xff]
        %v382 = vld [vmem:[#allocation7 + $0x28] sm:$0xff]
        %v383 = vld [vmem:[#allocation7 + $0x30] sm:$0xff]
        %v384 = vld [vmem:[#allocation7 + $0x38] sm:$0xff]
        %v385 = vld [vmem:[#allocation7 + $0x40] sm:$0xff]
        %v386 = vld [vmem:[#allocation7 + $0x48] sm:$0xff]
        %v387 = vld [vmem:[#allocation7 + $0x50] sm:$0xff]
        %v388 = vld [vmem:[#allocation7 + $0x58] sm:$0xff]
        %v389 = vld [vmem:[#allocation7 + $0x60] sm:$0xff]
        %v390 = vld [vmem:[#allocation7 + $0x68] sm:$0xff]
        %v391 = vld [vmem:[#allocation7 + $0x70] sm:$0xff]
        %v392 = vld [vmem:[#allocation7 + $0x78] sm:$0xff]
        %v393 = vld [vmem:[#allocation7 + $0x80] sm:$0xff]
        %v394 = vld [vmem:[#allocation7 + $0x88] sm:$0xff]
        %v395 = vld [vmem:[#allocation7 + $0x90] sm:$0xff]
        %v396 = vld [vmem:[#allocation7 + $0x98] sm:$0xff]
        %v397 = vld [vmem:[#allocation7 + $0xa0] sm:$0xff]
        %v398 = vld [vmem:[#allocation7 + $0xa8] sm:$0xff]
        %v399 = vld [vmem:[#allocation7 + $0xb0] sm:$0xff]
        %v400 = vld [vmem:[#allocation7 + $0xb8] sm:$0xff]
        %v401 = vld [vmem:[#allocation7 + $0xc0] sm:$0xff]
        %v402 = vld [vmem:[#allocation7 + $0xc8] sm:$0xff]
        %v403 = vld [vmem:[#allocation7 + $0xd0] sm:$0xff]
        %v404 = vld [vmem:[#allocation7 + $0xd8] sm:$0xff]
        %v405 = vld [vmem:[#allocation7 + $0xe0] sm:$0xff]
        %v406 = vld [vmem:[#allocation7 + $0xe8] sm:$0xff]
        %v407 = vld [vmem:[#allocation7 + $0xf0] sm:$0xff]
        %v408 = vld [vmem:[#allocation7 + $0xf8] sm:$0xff]
        %v409 = vld [vmem:[#allocation7 + $0x100] sm:$0xff]
        %v410 = vld [vmem:[#allocation7 + $0x108] sm:$0xff]
        %v411 = vld [vmem:[#allocation7 + $0x110] sm:$0xff]
        %v412 = vld [vmem:[#allocation7 + $0x118] sm:$0xff]
        %v413 = vld [vmem:[#allocation7 + $0x120] sm:$0xff]
        %v414 = vld [vmem:[#allocation7 + $0x128] sm:$0xff]
        %v415 = vld [vmem:[#allocation7 + $0x130] sm:$0xff]
        %v416 = vld [vmem:[#allocation7 + $0x138] sm:$0xff]
        %v417 = vld [vmem:[#allocation7 + $0x140] sm:$0xff]
        %v418 = vld [vmem:[#allocation7 + $0x148] sm:$0xff]
        %v419 = vld [vmem:[#allocation7 + $0x150] sm:$0xff]
        %v420 = vld [vmem:[#allocation7 + $0x158] sm:$0xff]
        %v421 = vld [vmem:[#allocation7 + $0x160] sm:$0xff]
        %v422 = vld [vmem:[#allocation7 + $0x168] sm:$0xff]
        %v423 = vld [vmem:[#allocation7 + $0x170] sm:$0xff]
        %v424 = vld [vmem:[#allocation7 + $0x178] sm:$0xff]
        %v425 = vld [vmem:[#allocation7 + $0x180] sm:$0xf]
        %v426 = vld [vmem:[#allocation7 + $0x188] sm:$0xf]
        %v427 = vld [vmem:[#allocation7 + $0x190] sm:$0xf]
        %v428 = vld [vmem:[#allocation7 + $0x198] sm:$0xf]
        %v429 = vld [vmem:[%s4] sm:$0xf]
        %v431 = vlaneseq
        %v432 = vshrl.u32 %v431, 7
        %v433 = vsub.s32 0, %v432
        %v434 = vrot.slane %v429, %v433
        %v435 = vlaneseq
        %v436 = vshrl.u32 %v435, 7
        %v437 = vsub.s32 1, %v436
        %v438 = vrot.slane %v429, %v437
        %v439 = vlaneseq
        %v440 = vshrl.u32 %v439, 7
        %v441 = vsub.s32 2, %v440
        %v442 = vrot.slane %v429, %v441
        %v443 = vlaneseq
        %v444 = vshrl.u32 %v443, 7
        %v445 = vsub.s32 3, %v444
        %v446 = vrot.slane %v429, %v445
        %vm451 = vcmask 818176
        %v453 = vsel %vm451, %v373, 0
        %v456 = vsel %vm451, %v374, 0
        %v459 = vsel %vm451, %v375, 0
        %v462 = vsel %vm451, %v376, 0
        %vm464 = vcmask 1043456
        %v466 = vsel %vm464, %v425, 0
        %v469 = vsel %vm464, %v426, 0
        %v472 = vsel %vm464, %v427, 0
        %v475 = vsel %vm464, %v428, 0
        %477 = vmatprep.subr.mxu0 %v378
        %478 = vmatpush1.msra.mxu0 %v377
        %479 = vmatprep.subr.mxu0 %v382
        %480 = vmatpush1.msra.mxu0 %v381
        %481 = vmatprep.subr.mxu0 %v386
        %482 = vmatpush1.msra.mxu0 %v385
        %483 = vmatprep.subr.mxu0 %v390
        %484 = vmatpush1.msra.mxu0 %v389
        %485 = vmatprep.subr.mxu0 %v394
        %486 = vmatpush1.msra.mxu0 %v393
        %487 = vmatprep.subr.mxu0 %v398
        %488 = vmatpush1.msra.mxu0 %v397
        %489 = vmatprep.subr.mxu0 %v402
        %490 = vmatpush1.msra.mxu0 %v401
        %491 = vmatprep.subr.mxu0 %v406
        %492 = vmatpush1.msra.mxu0 %v405
        %493 = vmatprep.subr.mxu0 %v410
        %494 = vmatpush1.msra.mxu0 %v409
        %495 = vmatprep.subr.mxu0 %v414
        %496 = vmatpush1.msra.mxu0 %v413
        %497 = vmatprep.subr.mxu0 %v418
        %498 = vmatpush1.msra.mxu0 %v417
        %499 = vmatprep.subr.mxu0 %v422
        %500 = vmatpush1.msra.mxu0 %v421
        %501 = vmatprep.subr.mxu0 %v469
        %502 = vmatpush1.msra.mxu0 %v466
        %503 = vmatprep.subr.mxu0 0.0
        %504 = vmatpush1.msra.mxu0 0.0
        %505 = vmatprep.subr.mxu0 0.0
        %506 = vmatpush1.msra.mxu0 0.0
        %507 = vmatprep.subr.mxu0 0.0
        %508 = vmatpush1.msra.mxu0 0.0
        %509 = vmatprep.subr.mxu0 0.0
        %510 = vmatpush1.msra.mxu0 0.0
        %511 = vmatprep.subr.mxu0 0.0
        %512 = vmatpush1.msra.mxu0 0.0
        %513 = vmatprep.subr.mxu0 0.0
        %514 = vmatpush1.msra.mxu0 0.0
        %515 = vmatprep.subr.mxu0 0.0
        %516 = vmatpush1.msra.mxu0 0.0
        %517 = vmatprep.subr.mxu0 0.0
        %518 = vmatpush1.msra.mxu0 0.0
        %519 = vmatprep.subr.mxu0 0.0
        %520 = vmatpush1.msra.mxu0 0.0
        %521 = vmatprep.subr.mxu0 0.0
        %522 = vmatpush1.msra.mxu0 0.0
        %523 = vmatprep.subr.mxu0 0.0
        %524 = vmatpush1.msra.mxu0 0.0
        %525 = vmatprep.subr.mxu0 0.0
        %526 = vmatpush1.msra.mxu0 0.0
        %527 = vmatprep.subr.mxu0 0.0
        %528 = vmatpush1.msra.mxu0 0.0
        %529 = vmatprep.subr.mxu0 0.0
        %530 = vmatpush1.msra.mxu0 0.0
        %531 = vmatprep.subr.mxu0 0.0
        %532 = vmatpush1.msra.mxu0 0.0
        %533 = vmatprep.subr.mxu0 0.0
        %534 = vmatpush1.msra.mxu0 0.0
        %535 = vmatprep.subr.mxu0 0.0
        %536 = vmatpush1.msra.mxu0 0.0
        %537 = vmatprep.subr.mxu0 0.0
        %538 = vmatpush1.msra.mxu0 0.0
        %539 = vmatprep.subr.mxu0 0.0
        %540 = vmatpush1.msra.mxu0 0.0
        %541 = vmatprep.mubr.f32.mxu0 0.0
        %542 = vmatmul.mubr.f32.gmra.mrb[0].mxu0 %v453
        %v543 = vpop.f32.mrb[0].mxu0
        %v544 = vadd.f32 %v434, %v543
        %v545 = vpop.f32.mrb[0].mxu0
        %v546 = vadd.f32 %v438, %v545
        %547 = vmatprep.mubr.f32.mxu0 0.0
        %548 = vmatmul.mubr.f32.gmra.mrb[0].mxu0 %v456
        %v549 = vpop.f32.mrb[0].mxu0
        %v550 = vadd.f32 %v434, %v549
        %v551 = vpop.f32.mrb[0].mxu0
        %v552 = vadd.f32 %v438, %v551
        %553 = vmatprep.mubr.f32.mxu0 0.0
        %554 = vmatmul.mubr.f32.gmra.mrb[0].mxu0 %v459
        %v555 = vpop.f32.mrb[0].mxu0
        %v556 = vadd.f32 %v434, %v555
        %v557 = vpop.f32.mrb[0].mxu0
        %v558 = vadd.f32 %v438, %v557
        %559 = vmatprep.mubr.f32.mxu0 0.0
        %560 = vmatmul.mubr.f32.gmra.mrb[0].mxu0 %v462
        %v561 = vpop.f32.mrb[0].mxu0
        %v562 = vadd.f32 %v434, %v561
        %v563 = vpop.f32.mrb[0].mxu0
        %v564 = vadd.f32 %v438, %v563
        %565 = vdwg.mxu0
        %566 = vmatprep.subr.mxu0 %v380
        %567 = vmatpush1.msra.mxu0 %v379
        %568 = vmatprep.subr.mxu0 %v384
        %569 = vmatpush1.msra.mxu0 %v383
        %570 = vmatprep.subr.mxu0 %v388
        %571 = vmatpush1.msra.mxu0 %v387
        %572 = vmatprep.subr.mxu0 %v392
        %573 = vmatpush1.msra.mxu0 %v391
        %574 = vmatprep.subr.mxu0 %v396
        %575 = vmatpush1.msra.mxu0 %v395
        %576 = vmatprep.subr.mxu0 %v400
        %577 = vmatpush1.msra.mxu0 %v399
        %578 = vmatprep.subr.mxu0 %v404
        %579 = vmatpush1.msra.mxu0 %v403
        %580 = vmatprep.subr.mxu0 %v408
        %581 = vmatpush1.msra.mxu0 %v407
        %582 = vmatprep.subr.mxu0 %v412
        %583 = vmatpush1.msra.mxu0 %v411
        %584 = vmatprep.subr.mxu0 %v416
        %585 = vmatpush1.msra.mxu0 %v415
        %586 = vmatprep.subr.mxu0 %v420
        %587 = vmatpush1.msra.mxu0 %v419
        %588 = vmatprep.subr.mxu0 %v424
        %589 = vmatpush1.msra.mxu0 %v423
        %590 = vmatprep.subr.mxu0 %v475
        %591 = vmatpush1.msra.mxu0 %v472
        %592 = vmatprep.subr.mxu0 0.0
        %593 = vmatpush1.msra.mxu0 0.0
        %594 = vmatprep.subr.mxu0 0.0
        %595 = vmatpush1.msra.mxu0 0.0
        %596 = vmatprep.subr.mxu0 0.0
        %597 = vmatpush1.msra.mxu0 0.0
        %598 = vmatprep.subr.mxu0 0.0
        %599 = vmatpush1.msra.mxu0 0.0
        %600 = vmatprep.subr.mxu0 0.0
        %601 = vmatpush1.msra.mxu0 0.0
        %602 = vmatprep.subr.mxu0 0.0
        %603 = vmatpush1.msra.mxu0 0.0
        %604 = vmatprep.subr.mxu0 0.0
        %605 = vmatpush1.msra.mxu0 0.0
        %606 = vmatprep.subr.mxu0 0.0
        %607 = vmatpush1.msra.mxu0 0.0
        %608 = vmatprep.subr.mxu0 0.0
        %609 = vmatpush1.msra.mxu0 0.0
        %610 = vmatprep.subr.mxu0 0.0
        %611 = vmatpush1.msra.mxu0 0.0
        %612 = vmatprep.subr.mxu0 0.0
        %613 = vmatpush1.msra.mxu0 0.0
        %614 = vmatprep.subr.mxu0 0.0
        %615 = vmatpush1.msra.mxu0 0.0
        %616 = vmatprep.subr.mxu0 0.0
        %617 = vmatpush1.msra.mxu0 0.0
        %618 = vmatprep.subr.mxu0 0.0
        %619 = vmatpush1.msra.mxu0 0.0
        %620 = vmatprep.subr.mxu0 0.0
        %621 = vmatpush1.msra.mxu0 0.0
        %622 = vmatprep.subr.mxu0 0.0
        %623 = vmatpush1.msra.mxu0 0.0
        %624 = vmatprep.subr.mxu0 0.0
        %625 = vmatpush1.msra.mxu0 0.0
        %626 = vmatprep.subr.mxu0 0.0
        %627 = vmatpush1.msra.mxu0 0.0
        %628 = vmatprep.subr.mxu0 0.0
        %629 = vmatpush1.msra.mxu0 0.0
        %630 = vmatprep.mubr.f32.mxu0 0.0
        %631 = vmatmul.mubr.f32.gmra.mrb[0].mxu0 %v453
        %v632 = vpop.f32.mrb[0].mxu0
        %v633 = vadd.f32 %v442, %v632
        %v634 = vpop.f32.mrb[0].mxu0
        %v635 = vadd.f32 %v446, %v634
        %636 = vmatprep.mubr.f32.mxu0 0.0
        %637 = vmatmul.mubr.f32.gmra.mrb[0].mxu0 %v456
        %v638 = vpop.f32.mrb[0].mxu0
        %v639 = vadd.f32 %v442, %v638
        %v640 = vpop.f32.mrb[0].mxu0
        %v641 = vadd.f32 %v446, %v640
        %642 = vmatprep.mubr.f32.mxu0 0.0
        %643 = vmatmul.mubr.f32.gmra.mrb[0].mxu0 %v459
        %v644 = vpop.f32.mrb[0].mxu0
        %v645 = vadd.f32 %v442, %v644
        %v646 = vpop.f32.mrb[0].mxu0
        %v647 = vadd.f32 %v446, %v646
        %648 = vmatprep.mubr.f32.mxu0 0.0
        %649 = vmatmul.mubr.f32.gmra.mrb[0].mxu0 %v462
        %v650 = vpop.f32.mrb[0].mxu0
        %v651 = vadd.f32 %v442, %v650
        %v652 = vpop.f32.mrb[0].mxu0
        %v653 = vadd.f32 %v446, %v652
        %654 = vdwg.mxu0
        %v655 = vld [vmem:[%s366] sm:$0xff]
        %v656 = vld [vmem:[#allocation9] sm:$0xff]
        %v657 = vld [vmem:[#allocation9 + $0x8] sm:$0xff]
        %v658 = vld [vmem:[#allocation9 + $0x10] sm:$0xff]
        %v659 = vld [vmem:[#allocation9 + $0x18] sm:$0xff]
        %v660 = vld [vmem:[#allocation9 + $0x20] sm:$0xff]
        %v661 = vld [vmem:[#allocation9 + $0x28] sm:$0xff]
        %v662 = vld [vmem:[#allocation9 + $0x30] sm:$0xff]
        %v663 = vld [vmem:[#allocation9 + $0x38] sm:$0xff]
        %v664 = vld [vmem:[#allocation9 + $0x40] sm:$0xff]
        %v665 = vld [vmem:[#allocation9 + $0x48] sm:$0xff]
        %v666 = vld [vmem:[#allocation9 + $0x50] sm:$0xff]
        %v667 = vld [vmem:[#allocation9 + $0x58] sm:$0xff]
        %v668 = vld [vmem:[#allocation9 + $0x60] sm:$0xff]
        %v669 = vld [vmem:[#allocation9 + $0x68] sm:$0xff]
        %v670 = vld [vmem:[#allocation9 + $0x70] sm:$0xff]
        %v671 = vld [vmem:[#allocation9 + $0x78] sm:$0xff]
        %v672 = vld [vmem:[#allocation9 + $0x80] sm:$0xff]
        %v673 = vld [vmem:[#allocation9 + $0x88] sm:$0xff]
        %v674 = vld [vmem:[#allocation9 + $0x90] sm:$0xff]
        %v675 = vld [vmem:[#allocation9 + $0x98] sm:$0xff]
        %v676 = vld [vmem:[#allocation9 + $0xa0] sm:$0xff]
        %v677 = vld [vmem:[#allocation9 + $0xa8] sm:$0xff]
        %v678 = vld [vmem:[#allocation9 + $0xb0] sm:$0xff]
        %v679 = vld [vmem:[#allocation9 + $0xb8] sm:$0xff]
        %v680 = vld [vmem:[#allocation9 + $0xc0] sm:$0xff]
        %v681 = vld [vmem:[#allocation9 + $0xc8] sm:$0xff]
        %v682 = vld [vmem:[#allocation9 + $0xd0] sm:$0xff]
        %v683 = vld [vmem:[#allocation9 + $0xd8] sm:$0xff]
        %v684 = vld [vmem:[#allocation9 + $0xe0] sm:$0xff]
        %v685 = vld [vmem:[#allocation9 + $0xe8] sm:$0xff]
        %v686 = vld [vmem:[#allocation9 + $0xf0] sm:$0xff]
        %v687 = vld [vmem:[#allocation9 + $0xf8] sm:$0xff]
        %v688 = vld [vmem:[#allocation9 + $0x100] sm:$0xff]
        %v689 = vld [vmem:[#allocation9 + $0x108] sm:$0xff]
        %v690 = vld [vmem:[#allocation9 + $0x110] sm:$0xff]
        %v691 = vld [vmem:[#allocation9 + $0x118] sm:$0xff]
        %v692 = vld [vmem:[#allocation9 + $0x120] sm:$0xff]
        %v693 = vld [vmem:[#allocation9 + $0x128] sm:$0xff]
        %v694 = vld [vmem:[#allocation9 + $0x130] sm:$0xff]
        %v695 = vld [vmem:[#allocation9 + $0x138] sm:$0xff]
        %v696 = vld [vmem:[#allocation9 + $0x140] sm:$0xff]
        %v697 = vld [vmem:[#allocation9 + $0x148] sm:$0xff]
        %v698 = vld [vmem:[#allocation9 + $0x150] sm:$0xff]
        %v699 = vld [vmem:[#allocation9 + $0x158] sm:$0xff]
        %v700 = vld [vmem:[#allocation9 + $0x160] sm:$0xff]
        %v701 = vld [vmem:[#allocation9 + $0x168] sm:$0xff]
        %v702 = vld [vmem:[#allocation9 + $0x170] sm:$0xff]
        %v703 = vld [vmem:[#allocation9 + $0x178] sm:$0xff]
        %v704 = vld [vmem:[#allocation9 + $0x180] sm:$0xff]
        %v705 = vld [vmem:[#allocation9 + $0x188] sm:$0xff]
        %v706 = vld [vmem:[#allocation9 + $0x190] sm:$0xff]
        %v707 = vld [vmem:[#allocation9 + $0x198] sm:$0xff]
        %v708 = vld [vmem:[#allocation9 + $0x1a0] sm:$0xff]
        %v709 = vld [vmem:[#allocation9 + $0x1a8] sm:$0xff]
        %v710 = vld [vmem:[#allocation9 + $0x1b0] sm:$0xff]
        %v711 = vld [vmem:[#allocation9 + $0x1b8] sm:$0xff]
        %v712 = vld [vmem:[#allocation9 + $0x1c0] sm:$0xff]
        %v713 = vld [vmem:[#allocation9 + $0x1c8] sm:$0xff]
        %v714 = vld [vmem:[#allocation9 + $0x1d0] sm:$0xff]
        %v715 = vld [vmem:[#allocation9 + $0x1d8] sm:$0xff]
        %v716 = vld [vmem:[#allocation9 + $0x1e0] sm:$0xff]
        %v717 = vld [vmem:[#allocation9 + $0x1e8] sm:$0xff]
        %v718 = vld [vmem:[#allocation9 + $0x1f0] sm:$0xff]
        %v719 = vld [vmem:[#allocation9 + $0x1f8] sm:$0xff]
        %s720 = smul.u32 %s29, 4
        %v721 = vld [vmem:[#allocation2] sm:$0xff]
        %v722 = vld [vmem:[#allocation3] sm:$0xff]
        %723 = vmatprep.subr.mxu0 %v657
        %724 = vmatpush1.msra.mxu0 %v656
        %725 = vmatprep.subr.mxu0 %v661
        %726 = vmatpush1.msra.mxu0 %v660
        %727 = vmatprep.subr.mxu0 %v665
        %728 = vmatpush1.msra.mxu0 %v664
        %729 = vmatprep.subr.mxu0 %v669
        %730 = vmatpush1.msra.mxu0 %v668
        %731 = vmatprep.subr.mxu0 %v673
        %732 = vmatpush1.msra.mxu0 %v672
        %733 = vmatprep.subr.mxu0 %v677
        %734 = vmatpush1.msra.mxu0 %v676
        %735 = vmatprep.subr.mxu0 %v681
        %736 = vmatpush1.msra.mxu0 %v680
        %737 = vmatprep.subr.mxu0 %v685
        %738 = vmatpush1.msra.mxu0 %v684
        %739 = vmatprep.subr.mxu0 %v689
        %740 = vmatpush1.msra.mxu0 %v688
        %741 = vmatprep.subr.mxu0 %v693
        %742 = vmatpush1.msra.mxu0 %v692
        %743 = vmatprep.subr.mxu0 %v697
        %744 = vmatpush1.msra.mxu0 %v696
        %745 = vmatprep.subr.mxu0 %v701
        %746 = vmatpush1.msra.mxu0 %v700
        %747 = vmatprep.subr.mxu0 %v705
        %748 = vmatpush1.msra.mxu0 %v704
        %749 = vmatprep.subr.mxu0 %v709
        %750 = vmatpush1.msra.mxu0 %v708
        %751 = vmatprep.subr.mxu0 %v713
        %752 = vmatpush1.msra.mxu0 %v712
        %753 = vmatprep.subr.mxu0 %v717
        %754 = vmatpush1.msra.mxu0 %v716
        %755 = vmatprep.subr.mxu0 0.0
        %756 = vmatpush1.msra.mxu0 0.0
        %757 = vmatprep.subr.mxu0 0.0
        %758 = vmatpush1.msra.mxu0 0.0
        %759 = vmatprep.subr.mxu0 0.0
        %760 = vmatpush1.msra.mxu0 0.0
        %761 = vmatprep.subr.mxu0 0.0
        %762 = vmatpush1.msra.mxu0 0.0
        %763 = vmatprep.subr.mxu0 0.0
        %764 = vmatpush1.msra.mxu0 0.0
        %765 = vmatprep.subr.mxu0 0.0
        %766 = vmatpush1.msra.mxu0 0.0
        %767 = vmatprep.subr.mxu0 0.0
        %768 = vmatpush1.msra.mxu0 0.0
        %769 = vmatprep.subr.mxu0 0.0
        %770 = vmatpush1.msra.mxu0 0.0
        %771 = vmatprep.subr.mxu0 0.0
        %772 = vmatpush1.msra.mxu0 0.0
        %773 = vmatprep.subr.mxu0 0.0
        %774 = vmatpush1.msra.mxu0 0.0
        %775 = vmatprep.subr.mxu0 0.0
        %776 = vmatpush1.msra.mxu0 0.0
        %777 = vmatprep.subr.mxu0 0.0
        %778 = vmatpush1.msra.mxu0 0.0
        %779 = vmatprep.subr.mxu0 0.0
        %780 = vmatpush1.msra.mxu0 0.0
        %781 = vmatprep.subr.mxu0 0.0
        %782 = vmatpush1.msra.mxu0 0.0
        %783 = vmatprep.subr.mxu0 0.0
        %784 = vmatpush1.msra.mxu0 0.0
        %785 = vmatprep.subr.mxu0 0.0
        %786 = vmatpush1.msra.mxu0 0.0
        %787 = vmatprep.mubr.f32.mxu0 0.0
        %788 = vmatmul.mubr.f32.gmra.mrb[0].mxu0 %v721
        %v789 = vpop.f32.mrb[0].mxu0
        %v790 = vadd.f32 0.0, %v789
        %v791 = vpop.f32.mrb[0].mxu0
        %v792 = vadd.f32 0.0, %v791
        %793 = vdwg.mxu0
        %794 = vmatprep.subr.mxu0 %v659
        %795 = vmatpush1.msra.mxu0 %v658
        %796 = vmatprep.subr.mxu0 %v663
        %797 = vmatpush1.msra.mxu0 %v662
        %798 = vmatprep.subr.mxu0 %v667
        %799 = vmatpush1.msra.mxu0 %v666
        %800 = vmatprep.subr.mxu0 %v671
        %801 = vmatpush1.msra.mxu0 %v670
        %802 = vmatprep.subr.mxu0 %v675
        %803 = vmatpush1.msra.mxu0 %v674
        %804 = vmatprep.subr.mxu0 %v679
        %805 = vmatpush1.msra.mxu0 %v678
        %806 = vmatprep.subr.mxu0 %v683
        %807 = vmatpush1.msra.mxu0 %v682
        %808 = vmatprep.subr.mxu0 %v687
        %809 = vmatpush1.msra.mxu0 %v686
        %810 = vmatprep.subr.mxu0 %v691
        %811 = vmatpush1.msra.mxu0 %v690
        %812 = vmatprep.subr.mxu0 %v695
        %813 = vmatpush1.msra.mxu0 %v694
        %814 = vmatprep.subr.mxu0 %v699
        %815 = vmatpush1.msra.mxu0 %v698
        %816 = vmatprep.subr.mxu0 %v703
        %817 = vmatpush1.msra.mxu0 %v702
        %818 = vmatprep.subr.mxu0 %v707
        %819 = vmatpush1.msra.mxu0 %v706
        %820 = vmatprep.subr.mxu0 %v711
        %821 = vmatpush1.msra.mxu0 %v710
        %822 = vmatprep.subr.mxu0 %v715
        %823 = vmatpush1.msra.mxu0 %v714
        %824 = vmatprep.subr.mxu0 %v719
        %825 = vmatpush1.msra.mxu0 %v718
        %826 = vmatprep.subr.mxu0 0.0
        %827 = vmatpush1.msra.mxu0 0.0
        %828 = vmatprep.subr.mxu0 0.0
        %829 = vmatpush1.msra.mxu0 0.0
        %830 = vmatprep.subr.mxu0 0.0
        %831 = vmatpush1.msra.mxu0 0.0
        %832 = vmatprep.subr.mxu0 0.0
        %833 = vmatpush1.msra.mxu0 0.0
        %834 = vmatprep.subr.mxu0 0.0
        %835 = vmatpush1.msra.mxu0 0.0
        %836 = vmatprep.subr.mxu0 0.0
        %837 = vmatpush1.msra.mxu0 0.0
        %838 = vmatprep.subr.mxu0 0.0
        %839 = vmatpush1.msra.mxu0 0.0
        %840 = vmatprep.subr.mxu0 0.0
        %841 = vmatpush1.msra.mxu0 0.0
        %842 = vmatprep.subr.mxu0 0.0
        %843 = vmatpush1.msra.mxu0 0.0
        %844 = vmatprep.subr.mxu0 0.0
        %845 = vmatpush1.msra.mxu0 0.0
        %846 = vmatprep.subr.mxu0 0.0
        %847 = vmatpush1.msra.mxu0 0.0
        %848 = vmatprep.subr.mxu0 0.0
        %849 = vmatpush1.msra.mxu0 0.0
        %850 = vmatprep.subr.mxu0 0.0
        %851 = vmatpush1.msra.mxu0 0.0
        %852 = vmatprep.subr.mxu0 0.0
        %853 = vmatpush1.msra.mxu0 0.0
        %854 = vmatprep.subr.mxu0 0.0
        %855 = vmatpush1.msra.mxu0 0.0
        %856 = vmatprep.subr.mxu0 0.0
        %857 = vmatpush1.msra.mxu0 0.0
        %858 = vmatprep.mubr.f32.mxu0 0.0
        %859 = vmatmul.mubr.f32.gmra.mrb[0].mxu0 %v721
        %v860 = vpop.f32.mrb[0].mxu0
        %v861 = vadd.f32 0.0, %v860
        %v862 = vpop.f32.mrb[0].mxu0
        %v863 = vadd.f32 0.0, %v862
        %864 = vdwg.mxu0
        %v865 = vadd.f32 %v544, %v790
        %v866 = vadd.f32 %v546, %v792
        %v867 = vadd.f32 %v633, %v861
        %v868 = vadd.f32 %v635, %v863
        %v869 = vxor.u32 %v865, 2147483648
        %v870 = vmul.f32 %v869, 1.442695
        %v871 = vpow.pop %v870
        %v872 = vadd.f32 %v871, 1.0
        %v873 = vrcp.pop %v872
        %v874 = vmul.f32 1.0, %v873
        %v875 = vxor.u32 %v866, 2147483648
        %v876 = vmul.f32 %v875, 1.442695
        %v877 = vpow.pop %v876
        %v878 = vadd.f32 %v877, 1.0
        %v879 = vrcp.pop %v878
        %v880 = vmul.f32 1.0, %v879
        %v881 = vtanh.pop %v867
        %v882 = vxor.u32 %v868, 2147483648
        %v883 = vmul.f32 %v882, 1.442695
        %v884 = vpow.pop %v883
        %v885 = vadd.f32 %v884, 1.0
        %v886 = vrcp.pop %v885
        %v887 = vmul.f32 1.0, %v886
        %v888 = vmul.f32 %v880, %v722
        %v889 = vmul.f32 %v874, %v881
        %v890 = vadd.f32 %v888, %v889
        %v891 = vtanh.pop %v890
        %v892 = vmul.f32 %v887, %v891
        %v893 = vstv %s720
        %vm894 = vcmp.lt.s32.totalorder %v893, %v655
        %v895 = vsel %vm894, 1, 0
        %896 = vset.pattern.permute.xlu0 0
        %897 = vperm.xlu0 %896, %v895
        %v898 = vpop.permute.xlu0 %897
        %vm899 = vcmp.eq.s32.totalorder %v898, 1
        %v900 = vsel %vm899, %v892, %v721
        %v901 = vsel %vm899, %v890, %v722
        %902 = vmatprep.subr.mxu0 %v657
        %903 = vmatpush1.msra.mxu0 %v656
        %904 = vmatprep.subr.mxu0 %v661
        %905 = vmatpush1.msra.mxu0 %v660
        %906 = vmatprep.subr.mxu0 %v665
        %907 = vmatpush1.msra.mxu0 %v664
        %908 = vmatprep.subr.mxu0 %v669
        %909 = vmatpush1.msra.mxu0 %v668
        %910 = vmatprep.subr.mxu0 %v673
        %911 = vmatpush1.msra.mxu0 %v672
        %912 = vmatprep.subr.mxu0 %v677
        %913 = vmatpush1.msra.mxu0 %v676
        %914 = vmatprep.subr.mxu0 %v681
        %915 = vmatpush1.msra.mxu0 %v680
        %916 = vmatprep.subr.mxu0 %v685
        %917 = vmatpush1.msra.mxu0 %v684
        %918 = vmatprep.subr.mxu0 %v689
        %919 = vmatpush1.msra.mxu0 %v688
        %920 = vmatprep.subr.mxu0 %v693
        %921 = vmatpush1.msra.mxu0 %v692
        %922 = vmatprep.subr.mxu0 %v697
        %923 = vmatpush1.msra.mxu0 %v696
        %924 = vmatprep.subr.mxu0 %v701
        %925 = vmatpush1.msra.mxu0 %v700
        %926 = vmatprep.subr.mxu0 %v705
        %927 = vmatpush1.msra.mxu0 %v704
        %928 = vmatprep.subr.mxu0 %v709
        %929 = vmatpush1.msra.mxu0 %v708
        %930 = vmatprep.subr.mxu0 %v713
        %931 = vmatpush1.msra.mxu0 %v712
        %932 = vmatprep.subr.mxu0 %v717
        %933 = vmatpush1.msra.mxu0 %v716
        %934 = vmatprep.subr.mxu0 0.0
        %935 = vmatpush1.msra.mxu0 0.0
        %936 = vmatprep.subr.mxu0 0.0
        %937 = vmatpush1.msra.mxu0 0.0
        %938 = vmatprep.subr.mxu0 0.0
        %939 = vmatpush1.msra.mxu0 0.0
        %940 = vmatprep.subr.mxu0 0.0
        %941 = vmatpush1.msra.mxu0 0.0
        %942 = vmatprep.subr.mxu0 0.0
        %943 = vmatpush1.msra.mxu0 0.0
        %944 = vmatprep.subr.mxu0 0.0
        %945 = vmatpush1.msra.mxu0 0.0
        %946 = vmatprep.subr.mxu0 0.0
        %947 = vmatpush1.msra.mxu0 0.0
        %948 = vmatprep.subr.mxu0 0.0
        %949 = vmatpush1.msra.mxu0 0.0
        %950 = vmatprep.subr.mxu0 0.0
        %951 = vmatpush1.msra.mxu0 0.0
        %952 = vmatprep.subr.mxu0 0.0
        %953 = vmatpush1.msra.mxu0 0.0
        %954 = vmatprep.subr.mxu0 0.0
        %955 = vmatpush1.msra.mxu0 0.0
        %956 = vmatprep.subr.mxu0 0.0
        %957 = vmatpush1.msra.mxu0 0.0
        %958 = vmatprep.subr.mxu0 0.0
        %959 = vmatpush1.msra.mxu0 0.0
        %960 = vmatprep.subr.mxu0 0.0
        %961 = vmatpush1.msra.mxu0 0.0
        %962 = vmatprep.subr.mxu0 0.0
        %963 = vmatpush1.msra.mxu0 0.0
        %964 = vmatprep.subr.mxu0 0.0
        %965 = vmatpush1.msra.mxu0 0.0
        %966 = vmatprep.mubr.f32.mxu0 0.0
        %967 = vmatmul.mubr.f32.gmra.mrb[0].mxu0 %v900
        %v968 = vpop.f32.mrb[0].mxu0
        %v969 = vadd.f32 0.0, %v968
        %v970 = vpop.f32.mrb[0].mxu0
        %v971 = vadd.f32 0.0, %v970
        %972 = vdwg.mxu0
        %973 = vmatprep.subr.mxu0 %v659
        %974 = vmatpush1.msra.mxu0 %v658
        %975 = vmatprep.subr.mxu0 %v663
        %976 = vmatpush1.msra.mxu0 %v662
        %977 = vmatprep.subr.mxu0 %v667
        %978 = vmatpush1.msra.mxu0 %v666
        %979 = vmatprep.subr.mxu0 %v671
        %980 = vmatpush1.msra.mxu0 %v670
        %981 = vmatprep.subr.mxu0 %v675
        %982 = vmatpush1.msra.mxu0 %v674
        %983 = vmatprep.subr.mxu0 %v679
        %984 = vmatpush1.msra.mxu0 %v678
        %985 = vmatprep.subr.mxu0 %v683
        %986 = vmatpush1.msra.mxu0 %v682
        %987 = vmatprep.subr.mxu0 %v687
        %988 = vmatpush1.msra.mxu0 %v686
        %989 = vmatprep.subr.mxu0 %v691
        %990 = vmatpush1.msra.mxu0 %v690
        %991 = vmatprep.subr.mxu0 %v695
        %992 = vmatpush1.msra.mxu0 %v694
        %993 = vmatprep.subr.mxu0 %v699
        %994 = vmatpush1.msra.mxu0 %v698
        %995 = vmatprep.subr.mxu0 %v703
        %996 = vmatpush1.msra.mxu0 %v702
        %997 = vmatprep.subr.mxu0 %v707
        %998 = vmatpush1.msra.mxu0 %v706
        %999 = vmatprep.subr.mxu0 %v711
        %1000 = vmatpush1.msra.mxu0 %v710
        %1001 = vmatprep.subr.mxu0 %v715
        %1002 = vmatpush1.msra.mxu0 %v714
        %1003 = vmatprep.subr.mxu0 %v719
        %1004 = vmatpush1.msra.mxu0 %v718
        %1005 = vmatprep.subr.mxu0 0.0
        %1006 = vmatpush1.msra.mxu0 0.0
        %1007 = vmatprep.subr.mxu0 0.0
        %1008 = vmatpush1.msra.mxu0 0.0
        %1009 = vmatprep.subr.mxu0 0.0
        %1010 = vmatpush1.msra.mxu0 0.0
        %1011 = vmatprep.subr.mxu0 0.0
        %1012 = vmatpush1.msra.mxu0 0.0
        %1013 = vmatprep.subr.mxu0 0.0
        %1014 = vmatpush1.msra.mxu0 0.0
        %1015 = vmatprep.subr.mxu0 0.0
        %1016 = vmatpush1.msra.mxu0 0.0
        %1017 = vmatprep.subr.mxu0 0.0
        %1018 = vmatpush1.msra.mxu0 0.0
        %1019 = vmatprep.subr.mxu0 0.0
        %1020 = vmatpush1.msra.mxu0 0.0
        %1021 = vmatprep.subr.mxu0 0.0
        %1022 = vmatpush1.msra.mxu0 0.0
        %1023 = vmatprep.subr.mxu0 0.0
        %1024 = vmatpush1.msra.mxu0 0.0
        %1025 = vmatprep.subr.mxu0 0.0
        %1026 = vmatpush1.msra.mxu0 0.0
        %1027 = vmatprep.subr.mxu0 0.0
        %1028 = vmatpush1.msra.mxu0 0.0
        %1029 = vmatprep.subr.mxu0 0.0
        %1030 = vmatpush1.msra.mxu0 0.0
        %1031 = vmatprep.subr.mxu0 0.0
        %1032 = vmatpush1.msra.mxu0 0.0
        %1033 = vmatprep.subr.mxu0 0.0
        %1034 = vmatpush1.msra.mxu0 0.0
        %1035 = vmatprep.subr.mxu0 0.0
        %1036 = vmatpush1.msra.mxu0 0.0
        %1037 = vmatprep.mubr.f32.mxu0 0.0
        %1038 = vmatmul.mubr.f32.gmra.mrb[0].mxu0 %v900
        %v1039 = vpop.f32.mrb[0].mxu0
        %v1040 = vadd.f32 0.0, %v1039
        %v1041 = vpop.f32.mrb[0].mxu0
        %v1042 = vadd.f32 0.0, %v1041
        %1043 = vdwg.mxu0
        %v1044 = vadd.f32 %v550, %v969
        %v1045 = vadd.f32 %v552, %v971
        %v1046 = vadd.f32 %v639, %v1040
        %v1047 = vadd.f32 %v641, %v1042
        %v1048 = vxor.u32 %v1044, 2147483648
        %v1049 = vmul.f32 %v1048, 1.442695
        %v1050 = vpow.pop %v1049
        %v1051 = vadd.f32 %v1050, 1.0
        %v1052 = vrcp.pop %v1051
        %v1053 = vmul.f32 1.0, %v1052
        %v1054 = vxor.u32 %v1045, 2147483648
        %v1055 = vmul.f32 %v1054, 1.442695
        %v1056 = vpow.pop %v1055
        %v1057 = vadd.f32 %v1056, 1.0
        %v1058 = vrcp.pop %v1057
        %v1059 = vmul.f32 1.0, %v1058
        %v1060 = vtanh.pop %v1046
        %v1061 = vxor.u32 %v1047, 2147483648
        %v1062 = vmul.f32 %v1061, 1.442695
        %v1063 = vpow.pop %v1062
        %v1064 = vadd.f32 %v1063, 1.0
        %v1065 = vrcp.pop %v1064
        %v1066 = vmul.f32 1.0, %v1065
        %v1067 = vmul.f32 %v1059, %v901
        %v1068 = vmul.f32 %v1053, %v1060
        %v1069 = vadd.f32 %v1067, %v1068
        %v1070 = vtanh.pop %v1069
        %v1071 = vmul.f32 %v1066, %v1070
        %s1072 = sadd.s32 %s720, 1
        %v1073 = vstv %s1072
        %vm1074 = vcmp.lt.s32.totalorder %v1073, %v655
        %v1075 = vsel %vm1074, 1, 0
        %1076 = vset.pattern.permute.xlu0 0
        %1077 = vperm.xlu0 %1076, %v1075
        %v1078 = vpop.permute.xlu0 %1077
        %vm1079 = vcmp.eq.s32.totalorder %v1078, 1
        %v1080 = vsel %vm1079, %v1071, %v900
        %v1081 = vsel %vm1079, %v1069, %v901
        %1082 = vmatprep.subr.mxu0 %v657
        %1083 = vmatpush1.msra.mxu0 %v656
        %1084 = vmatprep.subr.mxu0 %v661
        %1085 = vmatpush1.msra.mxu0 %v660
        %1086 = vmatprep.subr.mxu0 %v665
        %1087 = vmatpush1.msra.mxu0 %v664
        %1088 = vmatprep.subr.mxu0 %v669
        %1089 = vmatpush1.msra.mxu0 %v668
        %1090 = vmatprep.subr.mxu0 %v673
        %1091 = vmatpush1.msra.mxu0 %v672
        %1092 = vmatprep.subr.mxu0 %v677
        %1093 = vmatpush1.msra.mxu0 %v676
        %1094 = vmatprep.subr.mxu0 %v681
        %1095 = vmatpush1.msra.mxu0 %v680
        %1096 = vmatprep.subr.mxu0 %v685
        %1097 = vmatpush1.msra.mxu0 %v684
        %1098 = vmatprep.subr.mxu0 %v689
        %1099 = vmatpush1.msra.mxu0 %v688
        %1100 = vmatprep.subr.mxu0 %v693
        %1101 = vmatpush1.msra.mxu0 %v692
        %1102 = vmatprep.subr.mxu0 %v697
        %1103 = vmatpush1.msra.mxu0 %v696
        %1104 = vmatprep.subr.mxu0 %v701
        %1105 = vmatpush1.msra.mxu0 %v700
        %1106 = vmatprep.subr.mxu0 %v705
        %1107 = vmatpush1.msra.mxu0 %v704
        %1108 = vmatprep.subr.mxu0 %v709
        %1109 = vmatpush1.msra.mxu0 %v708
        %1110 = vmatprep.subr.mxu0 %v713
        %1111 = vmatpush1.msra.mxu0 %v712
        %1112 = vmatprep.subr.mxu0 %v717
        %1113 = vmatpush1.msra.mxu0 %v716
        %1114 = vmatprep.subr.mxu0 0.0
        %1115 = vmatpush1.msra.mxu0 0.0
        %1116 = vmatprep.subr.mxu0 0.0
        %1117 = vmatpush1.msra.mxu0 0.0
        %1118 = vmatprep.subr.mxu0 0.0
        %1119 = vmatpush1.msra.mxu0 0.0
        %1120 = vmatprep.subr.mxu0 0.0
        %1121 = vmatpush1.msra.mxu0 0.0
        %1122 = vmatprep.subr.mxu0 0.0
        %1123 = vmatpush1.msra.mxu0 0.0
        %1124 = vmatprep.subr.mxu0 0.0
        %1125 = vmatpush1.msra.mxu0 0.0
        %1126 = vmatprep.subr.mxu0 0.0
        %1127 = vmatpush1.msra.mxu0 0.0
        %1128 = vmatprep.subr.mxu0 0.0
        %1129 = vmatpush1.msra.mxu0 0.0
        %1130 = vmatprep.subr.mxu0 0.0
        %1131 = vmatpush1.msra.mxu0 0.0
        %1132 = vmatprep.subr.mxu0 0.0
        %1133 = vmatpush1.msra.mxu0 0.0
        %1134 = vmatprep.subr.mxu0 0.0
        %1135 = vmatpush1.msra.mxu0 0.0
        %1136 = vmatprep.subr.mxu0 0.0
        %1137 = vmatpush1.msra.mxu0 0.0
        %1138 = vmatprep.subr.mxu0 0.0
        %1139 = vmatpush1.msra.mxu0 0.0
        %1140 = vmatprep.subr.mxu0 0.0
        %1141 = vmatpush1.msra.mxu0 0.0
        %1142 = vmatprep.subr.mxu0 0.0
        %1143 = vmatpush1.msra.mxu0 0.0
        %1144 = vmatprep.subr.mxu0 0.0
        %1145 = vmatpush1.msra.mxu0 0.0
        %1146 = vmatprep.mubr.f32.mxu0 0.0
        %1147 = vmatmul.mubr.f32.gmra.mrb[0].mxu0 %v1080
        %v1148 = vpop.f32.mrb[0].mxu0
        %v1149 = vadd.f32 0.0, %v1148
        %v1150 = vpop.f32.mrb[0].mxu0
        %v1151 = vadd.f32 0.0, %v1150
        %1152 = vdwg.mxu0
        %1153 = vmatprep.subr.mxu0 %v659
        %1154 = vmatpush1.msra.mxu0 %v658
        %1155 = vmatprep.subr.mxu0 %v663
        %1156 = vmatpush1.msra.mxu0 %v662
        %1157 = vmatprep.subr.mxu0 %v667
        %1158 = vmatpush1.msra.mxu0 %v666
        %1159 = vmatprep.subr.mxu0 %v671
        %1160 = vmatpush1.msra.mxu0 %v670
        %1161 = vmatprep.subr.mxu0 %v675
        %1162 = vmatpush1.msra.mxu0 %v674
        %1163 = vmatprep.subr.mxu0 %v679
        %1164 = vmatpush1.msra.mxu0 %v678
        %1165 = vmatprep.subr.mxu0 %v683
        %1166 = vmatpush1.msra.mxu0 %v682
        %1167 = vmatprep.subr.mxu0 %v687
        %1168 = vmatpush1.msra.mxu0 %v686
        %1169 = vmatprep.subr.mxu0 %v691
        %1170 = vmatpush1.msra.mxu0 %v690
        %1171 = vmatprep.subr.mxu0 %v695
        %1172 = vmatpush1.msra.mxu0 %v694
        %1173 = vmatprep.subr.mxu0 %v699
        %1174 = vmatpush1.msra.mxu0 %v698
        %1175 = vmatprep.subr.mxu0 %v703
        %1176 = vmatpush1.msra.mxu0 %v702
        %1177 = vmatprep.subr.mxu0 %v707
        %1178 = vmatpush1.msra.mxu0 %v706
        %1179 = vmatprep.subr.mxu0 %v711
        %1180 = vmatpush1.msra.mxu0 %v710
        %1181 = vmatprep.subr.mxu0 %v715
        %1182 = vmatpush1.msra.mxu0 %v714
        %1183 = vmatprep.subr.mxu0 %v719
        %1184 = vmatpush1.msra.mxu0 %v718
        %1185 = vmatprep.subr.mxu0 0.0
        %1186 = vmatpush1.msra.mxu0 0.0
        %1187 = vmatprep.subr.mxu0 0.0
        %1188 = vmatpush1.msra.mxu0 0.0
        %1189 = vmatprep.subr.mxu0 0.0
        %1190 = vmatpush1.msra.mxu0 0.0
        %1191 = vmatprep.subr.mxu0 0.0
        %1192 = vmatpush1.msra.mxu0 0.0
        %1193 = vmatprep.subr.mxu0 0.0
        %1194 = vmatpush1.msra.mxu0 0.0
        %1195 = vmatprep.subr.mxu0 0.0
        %1196 = vmatpush1.msra.mxu0 0.0
        %1197 = vmatprep.subr.mxu0 0.0
        %1198 = vmatpush1.msra.mxu0 0.0
        %1199 = vmatprep.subr.mxu0 0.0
        %1200 = vmatpush1.msra.mxu0 0.0
        %1201 = vmatprep.subr.mxu0 0.0
        %1202 = vmatpush1.msra.mxu0 0.0
        %1203 = vmatprep.subr.mxu0 0.0
        %1204 = vmatpush1.msra.mxu0 0.0
        %1205 = vmatprep.subr.mxu0 0.0
        %1206 = vmatpush1.msra.mxu0 0.0
        %1207 = vmatprep.subr.mxu0 0.0
        %1208 = vmatpush1.msra.mxu0 0.0
        %1209 = vmatprep.subr.mxu0 0.0
        %1210 = vmatpush1.msra.mxu0 0.0
        %1211 = vmatprep.subr.mxu0 0.0
        %1212 = vmatpush1.msra.mxu0 0.0
        %1213 = vmatprep.subr.mxu0 0.0
        %1214 = vmatpush1.msra.mxu0 0.0
        %1215 = vmatprep.subr.mxu0 0.0
        %1216 = vmatpush1.msra.mxu0 0.0
        %1217 = vmatprep.mubr.f32.mxu0 0.0
        %1218 = vmatmul.mubr.f32.gmra.mrb[0].mxu0 %v1080
        %v1219 = vpop.f32.mrb[0].mxu0
        %v1220 = vadd.f32 0.0, %v1219
        %v1221 = vpop.f32.mrb[0].mxu0
        %v1222 = vadd.f32 0.0, %v1221
        %1223 = vdwg.mxu0
        %v1224 = vadd.f32 %v556, %v1149
        %v1225 = vadd.f32 %v558, %v1151
        %v1226 = vadd.f32 %v645, %v1220
        %v1227 = vadd.f32 %v647, %v1222
        %v1228 = vxor.u32 %v1224, 2147483648
        %v1229 = vmul.f32 %v1228, 1.442695
        %v1230 = vpow.pop %v1229
        %v1231 = vadd.f32 %v1230, 1.0
        %v1232 = vrcp.pop %v1231
        %v1233 = vmul.f32 1.0, %v1232
        %v1234 = vxor.u32 %v1225, 2147483648
        %v1235 = vmul.f32 %v1234, 1.442695
        %v1236 = vpow.pop %v1235
        %v1237 = vadd.f32 %v1236, 1.0
        %v1238 = vrcp.pop %v1237
        %v1239 = vmul.f32 1.0, %v1238
        %v1240 = vtanh.pop %v1226
        %v1241 = vxor.u32 %v1227, 2147483648
        %v1242 = vmul.f32 %v1241, 1.442695
        %v1243 = vpow.pop %v1242
        %v1244 = vadd.f32 %v1243, 1.0
        %v1245 = vrcp.pop %v1244
        %v1246 = vmul.f32 1.0, %v1245
        %v1247 = vmul.f32 %v1239, %v1081
        %v1248 = vmul.f32 %v1233, %v1240
        %v1249 = vadd.f32 %v1247, %v1248
        %v1250 = vtanh.pop %v1249
        %v1251 = vmul.f32 %v1246, %v1250
        %s1252 = sadd.s32 %s720, 2
        %v1253 = vstv %s1252
        %vm1254 = vcmp.lt.s32.totalorder %v1253, %v655
        %v1255 = vsel %vm1254, 1, 0
        %1256 = vset.pattern.permute.xlu0 0
        %1257 = vperm.xlu0 %1256, %v1255
        %v1258 = vpop.permute.xlu0 %1257
        %vm1259 = vcmp.eq.s32.totalorder %v1258, 1
        %v1260 = vsel %vm1259, %v1251, %v1080
        %v1261 = vsel %vm1259, %v1249, %v1081
        %1262 = vmatprep.subr.mxu0 %v657
        %1263 = vmatpush1.msra.mxu0 %v656
        %1264 = vmatprep.subr.mxu0 %v661
        %1265 = vmatpush1.msra.mxu0 %v660
        %1266 = vmatprep.subr.mxu0 %v665
        %1267 = vmatpush1.msra.mxu0 %v664
        %1268 = vmatprep.subr.mxu0 %v669
        %1269 = vmatpush1.msra.mxu0 %v668
        %1270 = vmatprep.subr.mxu0 %v673
        %1271 = vmatpush1.msra.mxu0 %v672
        %1272 = vmatprep.subr.mxu0 %v677
        %1273 = vmatpush1.msra.mxu0 %v676
        %1274 = vmatprep.subr.mxu0 %v681
        %1275 = vmatpush1.msra.mxu0 %v680
        %1276 = vmatprep.subr.mxu0 %v685
        %1277 = vmatpush1.msra.mxu0 %v684
        %1278 = vmatprep.subr.mxu0 %v689
        %1279 = vmatpush1.msra.mxu0 %v688
        %1280 = vmatprep.subr.mxu0 %v693
        %1281 = vmatpush1.msra.mxu0 %v692
        %1282 = vmatprep.subr.mxu0 %v697
        %1283 = vmatpush1.msra.mxu0 %v696
        %1284 = vmatprep.subr.mxu0 %v701
        %1285 = vmatpush1.msra.mxu0 %v700
        %1286 = vmatprep.subr.mxu0 %v705
        %1287 = vmatpush1.msra.mxu0 %v704
        %1288 = vmatprep.subr.mxu0 %v709
        %1289 = vmatpush1.msra.mxu0 %v708
        %1290 = vmatprep.subr.mxu0 %v713
        %1291 = vmatpush1.msra.mxu0 %v712
        %1292 = vmatprep.subr.mxu0 %v717
        %1293 = vmatpush1.msra.mxu0 %v716
        %1294 = vmatprep.subr.mxu0 0.0
        %1295 = vmatpush1.msra.mxu0 0.0
        %1296 = vmatprep.subr.mxu0 0.0
        %1297 = vmatpush1.msra.mxu0 0.0
        %1298 = vmatprep.subr.mxu0 0.0
        %1299 = vmatpush1.msra.mxu0 0.0
        %1300 = vmatprep.subr.mxu0 0.0
        %1301 = vmatpush1.msra.mxu0 0.0
        %1302 = vmatprep.subr.mxu0 0.0
        %1303 = vmatpush1.msra.mxu0 0.0
        %1304 = vmatprep.subr.mxu0 0.0
        %1305 = vmatpush1.msra.mxu0 0.0
        %1306 = vmatprep.subr.mxu0 0.0
        %1307 = vmatpush1.msra.mxu0 0.0
        %1308 = vmatprep.subr.mxu0 0.0
        %1309 = vmatpush1.msra.mxu0 0.0
        %1310 = vmatprep.subr.mxu0 0.0
        %1311 = vmatpush1.msra.mxu0 0.0
        %1312 = vmatprep.subr.mxu0 0.0
        %1313 = vmatpush1.msra.mxu0 0.0
        %1314 = vmatprep.subr.mxu0 0.0
        %1315 = vmatpush1.msra.mxu0 0.0
        %1316 = vmatprep.subr.mxu0 0.0
        %1317 = vmatpush1.msra.mxu0 0.0
        %1318 = vmatprep.subr.mxu0 0.0
        %1319 = vmatpush1.msra.mxu0 0.0
        %1320 = vmatprep.subr.mxu0 0.0
        %1321 = vmatpush1.msra.mxu0 0.0
        %1322 = vmatprep.subr.mxu0 0.0
        %1323 = vmatpush1.msra.mxu0 0.0
        %1324 = vmatprep.subr.mxu0 0.0
        %1325 = vmatpush1.msra.mxu0 0.0
        %1326 = vmatprep.mubr.f32.mxu0 0.0
        %1327 = vmatmul.mubr.f32.gmra.mrb[0].mxu0 %v1260
        %v1328 = vpop.f32.mrb[0].mxu0
        %v1329 = vadd.f32 0.0, %v1328
        %v1330 = vpop.f32.mrb[0].mxu0
        %v1331 = vadd.f32 0.0, %v1330
        %1332 = vdwg.mxu0
        %1333 = vmatprep.subr.mxu0 %v659
        %1334 = vmatpush1.msra.mxu0 %v658
        %1335 = vmatprep.subr.mxu0 %v663
        %1336 = vmatpush1.msra.mxu0 %v662
        %1337 = vmatprep.subr.mxu0 %v667
        %1338 = vmatpush1.msra.mxu0 %v666
        %1339 = vmatprep.subr.mxu0 %v671
        %1340 = vmatpush1.msra.mxu0 %v670
        %1341 = vmatprep.subr.mxu0 %v675
        %1342 = vmatpush1.msra.mxu0 %v674
        %1343 = vmatprep.subr.mxu0 %v679
        %1344 = vmatpush1.msra.mxu0 %v678
        %1345 = vmatprep.subr.mxu0 %v683
        %1346 = vmatpush1.msra.mxu0 %v682
        %1347 = vmatprep.subr.mxu0 %v687
        %1348 = vmatpush1.msra.mxu0 %v686
        %1349 = vmatprep.subr.mxu0 %v691
        %1350 = vmatpush1.msra.mxu0 %v690
        %1351 = vmatprep.subr.mxu0 %v695
        %1352 = vmatpush1.msra.mxu0 %v694
        %1353 = vmatprep.subr.mxu0 %v699
        %1354 = vmatpush1.msra.mxu0 %v698
        %1355 = vmatprep.subr.mxu0 %v703
        %1356 = vmatpush1.msra.mxu0 %v702
        %1357 = vmatprep.subr.mxu0 %v707
        %1358 = vmatpush1.msra.mxu0 %v706
        %1359 = vmatprep.subr.mxu0 %v711
        %1360 = vmatpush1.msra.mxu0 %v710
        %1361 = vmatprep.subr.mxu0 %v715
        %1362 = vmatpush1.msra.mxu0 %v714
        %1363 = vmatprep.subr.mxu0 %v719
        %1364 = vmatpush1.msra.mxu0 %v718
        %1365 = vmatprep.subr.mxu0 0.0
        %1366 = vmatpush1.msra.mxu0 0.0
        %1367 = vmatprep.subr.mxu0 0.0
        %1368 = vmatpush1.msra.mxu0 0.0
        %1369 = vmatprep.subr.mxu0 0.0
        %1370 = vmatpush1.msra.mxu0 0.0
        %1371 = vmatprep.subr.mxu0 0.0
        %1372 = vmatpush1.msra.mxu0 0.0
        %1373 = vmatprep.subr.mxu0 0.0
        %1374 = vmatpush1.msra.mxu0 0.0
        %1375 = vmatprep.subr.mxu0 0.0
        %1376 = vmatpush1.msra.mxu0 0.0
        %1377 = vmatprep.subr.mxu0 0.0
        %1378 = vmatpush1.msra.mxu0 0.0
        %1379 = vmatprep.subr.mxu0 0.0
        %1380 = vmatpush1.msra.mxu0 0.0
        %1381 = vmatprep.subr.mxu0 0.0
        %1382 = vmatpush1.msra.mxu0 0.0
        %1383 = vmatprep.subr.mxu0 0.0
        %1384 = vmatpush1.msra.mxu0 0.0
        %1385 = vmatprep.subr.mxu0 0.0
        %1386 = vmatpush1.msra.mxu0 0.0
        %1387 = vmatprep.subr.mxu0 0.0
        %1388 = vmatpush1.msra.mxu0 0.0
        %1389 = vmatprep.subr.mxu0 0.0
        %1390 = vmatpush1.msra.mxu0 0.0
        %1391 = vmatprep.subr.mxu0 0.0
        %1392 = vmatpush1.msra.mxu0 0.0
        %1393 = vmatprep.subr.mxu0 0.0
        %1394 = vmatpush1.msra.mxu0 0.0
        %1395 = vmatprep.subr.mxu0 0.0
        %1396 = vmatpush1.msra.mxu0 0.0
        %1397 = vmatprep.mubr.f32.mxu0 0.0
        %1398 = vmatmul.mubr.f32.gmra.mrb[0].mxu0 %v1260
        %v1399 = vpop.f32.mrb[0].mxu0
        %v1400 = vadd.f32 0.0, %v1399
        %v1401 = vpop.f32.mrb[0].mxu0
        %v1402 = vadd.f32 0.0, %v1401
        %1403 = vdwg.mxu0
        %v1404 = vadd.f32 %v562, %v1329
        %v1405 = vadd.f32 %v564, %v1331
        %v1406 = vadd.f32 %v651, %v1400
        %v1407 = vadd.f32 %v653, %v1402
        %v1408 = vxor.u32 %v1404, 2147483648
        %v1409 = vmul.f32 %v1408, 1.442695
        %v1410 = vpow.pop %v1409
        %v1411 = vadd.f32 %v1410, 1.0
        %v1412 = vrcp.pop %v1411
        %v1413 = vmul.f32 1.0, %v1412
        %v1414 = vxor.u32 %v1405, 2147483648
        %v1415 = vmul.f32 %v1414, 1.442695
        %v1416 = vpow.pop %v1415
        %v1417 = vadd.f32 %v1416, 1.0
        %v1418 = vrcp.pop %v1417
        %v1419 = vmul.f32 1.0, %v1418
        %v1420 = vtanh.pop %v1406
        %v1421 = vxor.u32 %v1407, 2147483648
        %v1422 = vmul.f32 %v1421, 1.442695
        %v1423 = vpow.pop %v1422
        %v1424 = vadd.f32 %v1423, 1.0
        %v1425 = vrcp.pop %v1424
        %v1426 = vmul.f32 1.0, %v1425
        %v1427 = vmul.f32 %v1419, %v1261
        %v1428 = vmul.f32 %v1413, %v1420
        %v1429 = vadd.f32 %v1427, %v1428
        %v1430 = vtanh.pop %v1429
        %v1431 = vmul.f32 %v1426, %v1430
        %s1432 = sadd.s32 %s720, 3
        %v1433 = vstv %s1432
        %vm1434 = vcmp.lt.s32.totalorder %v1433, %v655
        %v1435 = vsel %vm1434, 1, 0
        %1436 = vset.pattern.permute.xlu0 0
        %1437 = vperm.xlu0 %1436, %v1435
        %v1438 = vpop.permute.xlu0 %1437
        %vm1439 = vcmp.eq.s32.totalorder %v1438, 1
        %v1440 = vsel %vm1439, %v1431, %v1260
        %v1441 = vsel %vm1439, %v1429, %v1261
        %1442 = vst [vmem:[#allocation2] sm:$0xff] %v1440
        %1443 = vst [vmem:[#allocation3] sm:$0xff] %v1441
        %p1444 = scmp.eq.s32.totalorder %s29, 1
        // Predicated region
        $region69: #{tpu_custom_call.1} parent=47 // pred_check
          %p1445 = pneg %p1444
        $region70: #{tpu_custom_call.1} parent=47 // pred_check_branch
          %1447 = sbr.rel (%p1445) target = $region72
        $region71: #{tpu_custom_call.1} parent=47 // pred_region
          %v1448 = vld [vmem:[#allocation10] sm:$0xff]
          %v1449 = vld [vmem:[#allocation10 + $0x8] sm:$0xff]
          %v1450 = vld [vmem:[#allocation10 + $0x10] sm:$0xff]
          %v1451 = vld [vmem:[#allocation10 + $0x18] sm:$0xff]
          %v1452 = vld [vmem:[#allocation10 + $0x20] sm:$0xff]
          %v1453 = vld [vmem:[#allocation10 + $0x28] sm:$0xff]
          %v1454 = vld [vmem:[#allocation10 + $0x30] sm:$0xff]
          %v1455 = vld [vmem:[#allocation10 + $0x38] sm:$0xff]
          %v1456 = vld [vmem:[#allocation10 + $0x40] sm:$0xff]
          %v1457 = vld [vmem:[#allocation10 + $0x48] sm:$0xff]
          %v1458 = vld [vmem:[#allocation10 + $0x50] sm:$0xff]
          %v1459 = vld [vmem:[#allocation10 + $0x58] sm:$0xff]
          %v1460 = vld [vmem:[#allocation10 + $0x60] sm:$0xff]
          %v1461 = vld [vmem:[#allocation10 + $0x68] sm:$0xff]
          %v1462 = vld [vmem:[#allocation10 + $0x70] sm:$0xff]
          %v1463 = vld [vmem:[#allocation10 + $0x78] sm:$0xff]
          %v1464 = vld [vmem:[%s6] sm:$0x1]
          %v1466 = vlaneseq
          %v1467 = vshrl.u32 %v1466, 7
          %v1468 = vsub.s32 0, %v1467
          %v1469 = vrot.slane %v1464, %v1468
          %1471 = vmatprep.subr.mxu0 0.0
          %1472 = vmatpush1.msra.mxu0 %v1448
          %1473 = vmatprep.subr.mxu0 0.0
          %1474 = vmatpush1.msra.mxu0 %v1449
          %1475 = vmatprep.subr.mxu0 0.0
          %1476 = vmatpush1.msra.mxu0 %v1450
          %1477 = vmatprep.subr.mxu0 0.0
          %1478 = vmatpush1.msra.mxu0 %v1451
          %1479 = vmatprep.subr.mxu0 0.0
          %1480 = vmatpush1.msra.mxu0 %v1452
          %1481 = vmatprep.subr.mxu0 0.0
          %1482 = vmatpush1.msra.mxu0 %v1453
          %1483 = vmatprep.subr.mxu0 0.0
          %1484 = vmatpush1.msra.mxu0 %v1454
          %1485 = vmatprep.subr.mxu0 0.0
          %1486 = vmatpush1.msra.mxu0 %v1455
          %1487 = vmatprep.subr.mxu0 0.0
          %1488 = vmatpush1.msra.mxu0 %v1456
          %1489 = vmatprep.subr.mxu0 0.0
          %1490 = vmatpush1.msra.mxu0 %v1457
          %1491 = vmatprep.subr.mxu0 0.0
          %1492 = vmatpush1.msra.mxu0 %v1458
          %1493 = vmatprep.subr.mxu0 0.0
          %1494 = vmatpush1.msra.mxu0 %v1459
          %1495 = vmatprep.subr.mxu0 0.0
          %1496 = vmatpush1.msra.mxu0 %v1460
          %1497 = vmatprep.subr.mxu0 0.0
          %1498 = vmatpush1.msra.mxu0 %v1461
          %1499 = vmatprep.subr.mxu0 0.0
          %1500 = vmatpush1.msra.mxu0 %v1462
          %1501 = vmatprep.subr.mxu0 0.0
          %1502 = vmatpush1.msra.mxu0 %v1463
          %1503 = vmatprep.subr.mxu0 0.0
          %1504 = vmatpush1.msra.mxu0 0.0
          %1505 = vmatprep.subr.mxu0 0.0
          %1506 = vmatpush1.msra.mxu0 0.0
          %1507 = vmatprep.subr.mxu0 0.0
          %1508 = vmatpush1.msra.mxu0 0.0
          %1509 = vmatprep.subr.mxu0 0.0
          %1510 = vmatpush1.msra.mxu0 0.0
          %1511 = vmatprep.subr.mxu0 0.0
          %1512 = vmatpush1.msra.mxu0 0.0
          %1513 = vmatprep.subr.mxu0 0.0
          %1514 = vmatpush1.msra.mxu0 0.0
          %1515 = vmatprep.subr.mxu0 0.0
          %1516 = vmatpush1.msra.mxu0 0.0
          %1517 = vmatprep.subr.mxu0 0.0
          %1518 = vmatpush1.msra.mxu0 0.0
          %1519 = vmatprep.subr.mxu0 0.0
          %1520 = vmatpush1.msra.mxu0 0.0
          %1521 = vmatprep.subr.mxu0 0.0
          %1522 = vmatpush1.msra.mxu0 0.0
          %1523 = vmatprep.subr.mxu0 0.0
          %1524 = vmatpush1.msra.mxu0 0.0
          %1525 = vmatprep.subr.mxu0 0.0
          %1526 = vmatpush1.msra.mxu0 0.0
          %1527 = vmatprep.subr.mxu0 0.0
          %1528 = vmatpush1.msra.mxu0 0.0
          %1529 = vmatprep.subr.mxu0 0.0
          %1530 = vmatpush1.msra.mxu0 0.0
          %1531 = vmatprep.subr.mxu0 0.0
          %1532 = vmatpush1.msra.mxu0 0.0
          %1533 = vmatprep.subr.mxu0 0.0
          %1534 = vmatpush1.msra.mxu0 0.0
          %1535 = vmatprep.mubr.f32.mxu0 0.0
          %1536 = vmatmul.mubr.f32.gmra.mrb[0].mxu0 %v1440
          %v1537 = vpop.f32.mrb[0].mxu0
          %v1538 = vadd.f32 %v1469, %v1537
          %v1539 = vpop.f32.mrb[0].mxu0
          %1540 = vdwg.mxu0
          %1541 = vst [vmem:[#allocation12] sm:$0xff] %v1538
        $region72: #{tpu_custom_call.1} parent=47 // pred_fallthru
          _
        // Predicated region
        $region73: #{tpu_custom_call.1} parent=47 // pred_check
          %p1542 = pneg %p213
        $region74: #{tpu_custom_call.1} parent=47 // pred_check_branch
          %1544 = sbr.rel (%p1542) target = $region76
        $region75: #{tpu_custom_call.1} parent=47 // pred_region
          %s1546 = ssub.s32 128, 128
          %1547 = vsyncadd [#allocation6], %s1546
          %s1548 = smul.addr %s28, 128
          %s1549 = scalar_lea.hbm %s7, %s1548
          %s1551 = sshll.u32 [#allocation12], 4
          %s1552 = int_to_ptr.vmem [resolvable:$true] %s1551
          %1554 = dma.vmem_to_hbm [thread:$0]  %s1552, 128, %s1549, [#allocation6]
        $region76: #{tpu_custom_call.1} parent=47 // pred_fallthru
          _
        // Predicated region
        $region77: #{tpu_custom_call.1} parent=47 // pred_check
          %p1555 = pneg %p213
        $region78: #{tpu_custom_call.1} parent=47 // pred_check_branch
          %1557 = sbr.rel (%p1555) target = $region80
        $region79: #{tpu_custom_call.1} parent=47 // pred_region
          %1558 = dma.done [#allocation6], 128
        $region80: #{tpu_custom_call.1} parent=47 // pred_fallthru
          _
      $region48: #{tpu_custom_call.1} parent=5 // pred_fallthru
        _
      %p1559 = scmp.le.s32.totalorder 2, %s19
      // Predicated region
      $region81: #{tpu_custom_call.1} parent=5 // pred_check
        %p1560 = pneg %p1559
      $region82: #{tpu_custom_call.1} parent=5 // pred_check_branch
        %1562 = sbr.rel (%p1560) target = $region84
      $region83: #{tpu_custom_call.1} parent=5 // pred_region
        %s1563 = ssub.s32 %s19, 2
      $region84: #{tpu_custom_call.1} parent=5 // pred_fallthru
        _
    $region6: #{tpu_custom_call.1} parent=1 // loop_footer
      %s23 = sadd.s32 1, %s19
    $region7: #{tpu_custom_call.1} parent=1 // loop_footer_branch
      %18 = sbr.rel target = $region3
    $region8: #{tpu_custom_call.1} parent=1 // loop_exit
      _
    %1564 = vsyncpa [#allocation5], 1
    %s1565 = scalar_lea.sflag [#allocation5], 1
    %1566 = vsyncpa %s1565, 1
    %1567 = vsyncpa [#allocation8], 1
    %1568 = vsyncpa [#allocation11], 1
    %1569 = vsyncpa [#allocation6], 1
    %s1570 = scalar_lea.sflag [#allocation6], 1
    %1571 = vsyncpa %s1570, 1

</llo_original>
